<compile_context>
chip_gen: v7x
topology: tpu7x:2x2x1
jax: 0.10.0
libtpu: 0.0.40
codegen_flags: <defaults>
</compile_context>

<pallas_src>
import jax
import jax.numpy as jnp
import numpy as np
from jax.experimental import pallas as pl
from jax.experimental.pallas import tpu as pltpu

SELU_ALPHA = 1.6732632423543772
SELU_SCALE = 1.0507009873554805
BN_EPS = 1e-5
BN_PACK_LANES = 128  # lane-padded width of the packed gamma/beta array


def _make_fused_kernel(num_layers):
    """Build a kernel fusing `num_layers` x (Linear -> BN(train) -> SELU)."""

    def kernel(x_ref, *refs):
        w_refs = refs[:num_layers]
        bn_ref = refs[num_layers]
        o_ref = refs[num_layers + 1]

        bn = bn_ref[...]                               # (2*L, 128) f32, loaded once
        h = x_ref[...].astype(jnp.float32)             # (B, F_in)
        inv_b = jnp.float32(1.0 / h.shape[0])

        for l in range(num_layers):
            w = w_refs[l][...].astype(jnp.float32)     # (F_in, F_out)
            f_out = w.shape[1]

            # Linear (bias dropped: cancelled exactly by the BN batch mean).
            y = jnp.dot(h, w, preferred_element_type=jnp.float32,
                        precision=jax.lax.Precision.HIGHEST)        # (B, F_out)

            # BatchNorm1d, training mode: one-pass batch stats (biased variance).
            mean = jnp.sum(y, axis=0, keepdims=True) * inv_b        # (1, F_out)
            var = jnp.sum(y * y, axis=0, keepdims=True) * inv_b - mean * mean
            var = jnp.maximum(var, 0.0)

            gamma = bn[2 * l:2 * l + 1, :f_out]                     # (1, F_out)
            beta = bn[2 * l + 1:2 * l + 2, :f_out]                  # (1, F_out)
            scale = gamma * jax.lax.rsqrt(var + BN_EPS)             # (1, F_out)
            z = (y - mean) * scale + beta

            # SELU (clamp exp arg so the discarded branch never produces inf).
            h = SELU_SCALE * jnp.where(
                z > 0, z, SELU_ALPHA * (jnp.exp(jnp.minimum(z, 0.0)) - 1.0))

        o_ref[...] = h.astype(o_ref.dtype)

    return kernel


def point_hazard_pallas(x, weights, bn_packed):
    """Single fused pallas_call for the whole PointHazard stack."""
    B = x.shape[0]
    num_layers = len(weights)
    f_last = weights[-1].shape[1]
    vmem = pl.BlockSpec(memory_space=pltpu.MemorySpace.VMEM)

    out = pl.pallas_call(
        _make_fused_kernel(num_layers),
        out_shape=jax.ShapeDtypeStruct((B, f_last), jnp.float32),
        in_specs=[vmem] * (1 + num_layers + 1),   # x, W_0..W_{L-1}, packed gamma/beta
        out_specs=vmem,
    )(x, *weights, bn_packed)
    return jnp.squeeze(out, axis=-1)   # matches x.squeeze(-1); last fc width is 1


@jax.jit
def point_hazard_forward(x, weights, bn_packed):
    return point_hazard_pallas(x, weights, bn_packed)


def init_params(key, input_size, fc_point):
    """Deterministic parameter init for each (Linear, BatchNorm1d) pair."""
    dims = [input_size] + list(fc_point)
    weights, biases, gammas, betas = [], [], [], []
    for i in range(len(dims) - 1):
        f_in, f_out = dims[i], dims[i + 1]
        key, kw, kb, kg, kbt = jax.random.split(key, 5)
        bound = 1.0 / np.sqrt(f_in)
        weights.append(jax.random.uniform(kw, (f_in, f_out), jnp.float32, -bound, bound))
        biases.append(jax.random.uniform(kb, (f_out,), jnp.float32, -bound, bound))
        # Non-default affine params so the packed gamma/beta path is exercised.
        gammas.append(jax.random.uniform(kg, (f_out,), jnp.float32, 0.5, 1.5))
        betas.append(jax.random.uniform(kbt, (f_out,), jnp.float32, -0.5, 0.5))
    return weights, biases, gammas, betas


def pack_bn_params(gammas, betas):
    """Stack per-layer gamma/beta rows into one lane-padded (2*L, 128) array."""
    L = len(gammas)
    packed = np.zeros((2 * L, BN_PACK_LANES), np.float32)
    for l, (g, b) in enumerate(zip(gammas, betas)):
        packed[2 * l, : g.shape[0]] = np.asarray(g)
        packed[2 * l + 1, : b.shape[0]] = np.asarray(b)
    return jnp.asarray(packed)


def reference_forward(x, weights, biases, gammas, betas):
    """Pure-JAX reference reproducing the PyTorch forward (training-mode BN, with bias)."""
    for w, b, g, bt in zip(weights, biases, gammas, betas):
        y = jnp.dot(x, w, precision=jax.lax.Precision.HIGHEST) + b
        mean = jnp.mean(y, axis=0, keepdims=True)
        var = jnp.mean((y - mean) ** 2, axis=0, keepdims=True)
        z = g * (y - mean) / jnp.sqrt(var + BN_EPS) + bt
        x = SELU_SCALE * jnp.where(z > 0, z, SELU_ALPHA * (jnp.exp(z) - 1.0))
    return jnp.squeeze(x, axis=-1)


if __name__ == "__main__":
    # Small, forward-consistent shapes: args.input_size = 32, args.fc_point = [32, 16, 1]
    batch = 8
    input_size = 32
    fc_point = [32, 16, 1]

    key = jax.random.PRNGKey(0)
    key, kx = jax.random.split(key)
    x = jax.random.normal(kx, (batch, input_size), jnp.float32)

    weights, biases, gammas, betas = init_params(key, input_size, fc_point)
    bn_packed = pack_bn_params(gammas, betas)

    out = point_hazard_forward(x, tuple(weights), bn_packed)
    out = jax.block_until_ready(out)

    ref = reference_forward(x, weights, biases, gammas, betas)
    assert out.shape == (batch,), out.shape
    # Reference keeps the Linear bias; kernel drops it (exactly cancelled by the
    # training-mode BN batch mean) and uses one-pass variance, hence fp-level
    # (not bit-level) agreement.
    np.testing.assert_allclose(np.asarray(out), np.asarray(ref), rtol=1e-4, atol=1e-5)

    print("KERNEL_OK")
</pallas_src>

<mosaic_0001>
module attributes {stable_mosaic.version = 11 : i64} {
  func.func @kernel(%arg0: memref<8x32xf32, #tpu.memory_space<vmem>>, %arg1: memref<32x32xf32, #tpu.memory_space<vmem>>, %arg2: memref<32x16xf32, #tpu.memory_space<vmem>>, %arg3: memref<16x1xf32, #tpu.memory_space<vmem>>, %arg4: memref<6x128xf32, #tpu.memory_space<vmem>>, %arg5: memref<8x1xf32, #tpu.memory_space<vmem>>) attributes {dimension_semantics = [], scalar_prefetch = 0 : i64, scratch_operands = 0 : i64, tpu.core_type = #tpu.core_type<tc>} {
    %c0 = arith.constant 0 : index
    %c0_0 = arith.constant 0 : index
    %0 = vector.load %arg4[%c0, %c0_0] : memref<6x128xf32, #tpu.memory_space<vmem>>, vector<6x128xf32>
    %c0_1 = arith.constant 0 : index
    %c0_2 = arith.constant 0 : index
    %1 = vector.load %arg0[%c0_1, %c0_2] : memref<8x32xf32, #tpu.memory_space<vmem>>, vector<8x32xf32>
    %c0_3 = arith.constant 0 : index
    %c0_4 = arith.constant 0 : index
    %2 = vector.load %arg1[%c0_3, %c0_4] : memref<32x32xf32, #tpu.memory_space<vmem>>, vector<32x32xf32>
    %cst = arith.constant dense<0.000000e+00> : vector<8x32xf32>
    %3 = tpu.matmul %1, %2, %cst {dimension_numbers = #tpu.dot_dimension_numbers<[1], [0], [0], [1], [0, 0, 1, 1], [], []>, precision = #tpu.contract_precision<fp32>} : vector<8x32xf32>, vector<32x32xf32>, vector<8x32xf32> -> vector<8x32xf32>
    %cst_5 = arith.constant dense<0.000000e+00> : vector<32xf32>
    %4 = vector.multi_reduction <add>, %3, %cst_5 [0] : vector<8x32xf32> to vector<32xf32>
    %5 = vector.shape_cast %4 : vector<32xf32> to vector<1x32xf32>
    %cst_6 = arith.constant 1.250000e-01 : f32
    %6 = vector.broadcast %cst_6 : f32 to vector<1x32xf32>
    %7 = arith.mulf %5, %6 : vector<1x32xf32>
    %8 = arith.mulf %3, %3 : vector<8x32xf32>
    %cst_7 = arith.constant dense<0.000000e+00> : vector<32xf32>
    %9 = vector.multi_reduction <add>, %8, %cst_7 [0] : vector<8x32xf32> to vector<32xf32>
    %10 = vector.shape_cast %9 : vector<32xf32> to vector<1x32xf32>
    %cst_8 = arith.constant 1.250000e-01 : f32
    %11 = vector.broadcast %cst_8 : f32 to vector<1x32xf32>
    %12 = arith.mulf %10, %11 : vector<1x32xf32>
    %13 = arith.mulf %7, %7 : vector<1x32xf32>
    %14 = arith.subf %12, %13 : vector<1x32xf32>
    %cst_9 = arith.constant 0.000000e+00 : f32
    %15 = vector.broadcast %cst_9 : f32 to vector<1x32xf32>
    %16 = arith.maximumf %14, %15 : vector<1x32xf32>
    %17 = vector.extract_strided_slice %0 {offsets = [0, 0], sizes = [1, 32], strides = [1, 1]} : vector<6x128xf32> to vector<1x32xf32>
    %18 = vector.extract_strided_slice %0 {offsets = [1, 0], sizes = [1, 32], strides = [1, 1]} : vector<6x128xf32> to vector<1x32xf32>
    %cst_10 = arith.constant 9.99999974E-6 : f32
    %19 = vector.broadcast %cst_10 : f32 to vector<1x32xf32>
    %20 = arith.addf %16, %19 : vector<1x32xf32>
    %21 = math.rsqrt %20 : vector<1x32xf32>
    %22 = arith.mulf %17, %21 : vector<1x32xf32>
    %23 = vector.broadcast %7 : vector<1x32xf32> to vector<8x32xf32>
    %24 = arith.subf %3, %23 : vector<8x32xf32>
    %25 = vector.broadcast %22 : vector<1x32xf32> to vector<8x32xf32>
    %26 = arith.mulf %24, %25 : vector<8x32xf32>
    %27 = vector.broadcast %18 : vector<1x32xf32> to vector<8x32xf32>
    %28 = arith.addf %26, %27 : vector<8x32xf32>
    %cst_11 = arith.constant 0.000000e+00 : f32
    %29 = vector.broadcast %cst_11 : f32 to vector<8x32xf32>
    %30 = arith.cmpf ogt, %28, %29 : vector<8x32xf32>
    %cst_12 = arith.constant 0.000000e+00 : f32
    %31 = vector.broadcast %cst_12 : f32 to vector<8x32xf32>
    %32 = arith.minimumf %28, %31 : vector<8x32xf32>
    %33 = math.exp %32 : vector<8x32xf32>
    %cst_13 = arith.constant 1.000000e+00 : f32
    %34 = vector.broadcast %cst_13 : f32 to vector<8x32xf32>
    %35 = arith.subf %33, %34 : vector<8x32xf32>
    %cst_14 = arith.constant 1.67326319 : f32
    %36 = vector.broadcast %cst_14 : f32 to vector<8x32xf32>
    %37 = arith.mulf %36, %35 : vector<8x32xf32>
    %38 = arith.select %30, %28, %37 : vector<8x32xi1>, vector<8x32xf32>
    %cst_15 = arith.constant 1.05070102 : f32
    %39 = vector.broadcast %cst_15 : f32 to vector<8x32xf32>
    %40 = arith.mulf %39, %38 : vector<8x32xf32>
    %c0_16 = arith.constant 0 : index
    %c0_17 = arith.constant 0 : index
    %41 = vector.load %arg2[%c0_16, %c0_17] : memref<32x16xf32, #tpu.memory_space<vmem>>, vector<32x16xf32>
    %cst_18 = arith.constant dense<0.000000e+00> : vector<8x16xf32>
    %42 = tpu.matmul %40, %41, %cst_18 {dimension_numbers = #tpu.dot_dimension_numbers<[1], [0], [0], [1], [0, 0, 1, 1], [], []>, precision = #tpu.contract_precision<fp32>} : vector<8x32xf32>, vector<32x16xf32>, vector<8x16xf32> -> vector<8x16xf32>
    %cst_19 = arith.constant dense<0.000000e+00> : vector<16xf32>
    %43 = vector.multi_reduction <add>, %42, %cst_19 [0] : vector<8x16xf32> to vector<16xf32>
    %44 = vector.shape_cast %43 : vector<16xf32> to vector<1x16xf32>
    %cst_20 = arith.constant 1.250000e-01 : f32
    %45 = vector.broadcast %cst_20 : f32 to vector<1x16xf32>
    %46 = arith.mulf %44, %45 : vector<1x16xf32>
    %47 = arith.mulf %42, %42 : vector<8x16xf32>
    %cst_21 = arith.constant dense<0.000000e+00> : vector<16xf32>
    %48 = vector.multi_reduction <add>, %47, %cst_21 [0] : vector<8x16xf32> to vector<16xf32>
    %49 = vector.shape_cast %48 : vector<16xf32> to vector<1x16xf32>
    %cst_22 = arith.constant 1.250000e-01 : f32
    %50 = vector.broadcast %cst_22 : f32 to vector<1x16xf32>
    %51 = arith.mulf %49, %50 : vector<1x16xf32>
    %52 = arith.mulf %46, %46 : vector<1x16xf32>
    %53 = arith.subf %51, %52 : vector<1x16xf32>
    %cst_23 = arith.constant 0.000000e+00 : f32
    %54 = vector.broadcast %cst_23 : f32 to vector<1x16xf32>
    %55 = arith.maximumf %53, %54 : vector<1x16xf32>
    %56 = vector.extract_strided_slice %0 {offsets = [2, 0], sizes = [1, 16], strides = [1, 1]} : vector<6x128xf32> to vector<1x16xf32>
    %57 = vector.extract_strided_slice %0 {offsets = [3, 0], sizes = [1, 16], strides = [1, 1]} : vector<6x128xf32> to vector<1x16xf32>
    %cst_24 = arith.constant 9.99999974E-6 : f32
    %58 = vector.broadcast %cst_24 : f32 to vector<1x16xf32>
    %59 = arith.addf %55, %58 : vector<1x16xf32>
    %60 = math.rsqrt %59 : vector<1x16xf32>
    %61 = arith.mulf %56, %60 : vector<1x16xf32>
    %62 = vector.broadcast %46 : vector<1x16xf32> to vector<8x16xf32>
    %63 = arith.subf %42, %62 : vector<8x16xf32>
    %64 = vector.broadcast %61 : vector<1x16xf32> to vector<8x16xf32>
    %65 = arith.mulf %63, %64 : vector<8x16xf32>
    %66 = vector.broadcast %57 : vector<1x16xf32> to vector<8x16xf32>
    %67 = arith.addf %65, %66 : vector<8x16xf32>
    %cst_25 = arith.constant 0.000000e+00 : f32
    %68 = vector.broadcast %cst_25 : f32 to vector<8x16xf32>
    %69 = arith.cmpf ogt, %67, %68 : vector<8x16xf32>
    %cst_26 = arith.constant 0.000000e+00 : f32
    %70 = vector.broadcast %cst_26 : f32 to vector<8x16xf32>
    %71 = arith.minimumf %67, %70 : vector<8x16xf32>
    %72 = math.exp %71 : vector<8x16xf32>
    %cst_27 = arith.constant 1.000000e+00 : f32
    %73 = vector.broadcast %cst_27 : f32 to vector<8x16xf32>
    %74 = arith.subf %72, %73 : vector<8x16xf32>
    %cst_28 = arith.constant 1.67326319 : f32
    %75 = vector.broadcast %cst_28 : f32 to vector<8x16xf32>
    %76 = arith.mulf %75, %74 : vector<8x16xf32>
    %77 = arith.select %69, %67, %76 : vector<8x16xi1>, vector<8x16xf32>
    %cst_29 = arith.constant 1.05070102 : f32
    %78 = vector.broadcast %cst_29 : f32 to vector<8x16xf32>
    %79 = arith.mulf %78, %77 : vector<8x16xf32>
    %c0_30 = arith.constant 0 : index
    %c0_31 = arith.constant 0 : index
    %80 = vector.load %arg3[%c0_30, %c0_31] : memref<16x1xf32, #tpu.memory_space<vmem>>, vector<16x1xf32>
    %cst_32 = arith.constant dense<0.000000e+00> : vector<8x1xf32>
    %81 = tpu.matmul %79, %80, %cst_32 {dimension_numbers = #tpu.dot_dimension_numbers<[1], [0], [0], [1], [0, 0, 1, 1], [], []>, precision = #tpu.contract_precision<fp32>} : vector<8x16xf32>, vector<16x1xf32>, vector<8x1xf32> -> vector<8x1xf32>
    %cst_33 = arith.constant dense<0.000000e+00> : vector<1xf32>
    %82 = vector.multi_reduction <add>, %81, %cst_33 [0] : vector<8x1xf32> to vector<1xf32>
    %83 = vector.shape_cast %82 : vector<1xf32> to vector<1x1xf32>
    %cst_34 = arith.constant 1.250000e-01 : f32
    %84 = vector.broadcast %cst_34 : f32 to vector<1x1xf32>
    %85 = arith.mulf %83, %84 : vector<1x1xf32>
    %86 = arith.mulf %81, %81 : vector<8x1xf32>
    %cst_35 = arith.constant dense<0.000000e+00> : vector<1xf32>
    %87 = vector.multi_reduction <add>, %86, %cst_35 [0] : vector<8x1xf32> to vector<1xf32>
    %88 = vector.shape_cast %87 : vector<1xf32> to vector<1x1xf32>
    %cst_36 = arith.constant 1.250000e-01 : f32
    %89 = vector.broadcast %cst_36 : f32 to vector<1x1xf32>
    %90 = arith.mulf %88, %89 : vector<1x1xf32>
    %91 = arith.mulf %85, %85 : vector<1x1xf32>
    %92 = arith.subf %90, %91 : vector<1x1xf32>
    %cst_37 = arith.constant 0.000000e+00 : f32
    %93 = vector.broadcast %cst_37 : f32 to vector<1x1xf32>
    %94 = arith.maximumf %92, %93 : vector<1x1xf32>
    %95 = vector.extract_strided_slice %0 {offsets = [4, 0], sizes = [1, 1], strides = [1, 1]} : vector<6x128xf32> to vector<1x1xf32>
    %96 = vector.extract_strided_slice %0 {offsets = [5, 0], sizes = [1, 1], strides = [1, 1]} : vector<6x128xf32> to vector<1x1xf32>
    %cst_38 = arith.constant 9.99999974E-6 : f32
    %97 = vector.broadcast %cst_38 : f32 to vector<1x1xf32>
    %98 = arith.addf %94, %97 : vector<1x1xf32>
    %99 = math.rsqrt %98 : vector<1x1xf32>
    %100 = arith.mulf %95, %99 : vector<1x1xf32>
    %101 = vector.broadcast %85 : vector<1x1xf32> to vector<8x1xf32>
    %102 = arith.subf %81, %101 : vector<8x1xf32>
    %103 = vector.broadcast %100 : vector<1x1xf32> to vector<8x1xf32>
    %104 = arith.mulf %102, %103 : vector<8x1xf32>
    %105 = vector.broadcast %96 : vector<1x1xf32> to vector<8x1xf32>
    %106 = arith.addf %104, %105 : vector<8x1xf32>
    %cst_39 = arith.constant 0.000000e+00 : f32
    %107 = vector.broadcast %cst_39 : f32 to vector<8x1xf32>
    %108 = arith.cmpf ogt, %106, %107 : vector<8x1xf32>
    %cst_40 = arith.constant 0.000000e+00 : f32
    %109 = vector.broadcast %cst_40 : f32 to vector<8x1xf32>
    %110 = arith.minimumf %106, %109 : vector<8x1xf32>
    %111 = math.exp %110 : vector<8x1xf32>
    %cst_41 = arith.constant 1.000000e+00 : f32
    %112 = vector.broadcast %cst_41 : f32 to vector<8x1xf32>
    %113 = arith.subf %111, %112 : vector<8x1xf32>
    %cst_42 = arith.constant 1.67326319 : f32
    %114 = vector.broadcast %cst_42 : f32 to vector<8x1xf32>
    %115 = arith.mulf %114, %113 : vector<8x1xf32>
    %116 = arith.select %108, %106, %115 : vector<8x1xi1>, vector<8x1xf32>
    %cst_43 = arith.constant 1.05070102 : f32
    %117 = vector.broadcast %cst_43 : f32 to vector<8x1xf32>
    %118 = arith.mulf %117, %116 : vector<8x1xf32>
    %c0_44 = arith.constant 0 : index
    %c0_45 = arith.constant 0 : index
    %119 = vector.load %arg5[%c0_44, %c0_45] : memref<8x1xf32, #tpu.memory_space<vmem>>, vector<8x1xf32>
    tpu.vector_store %arg5[%c0_44, %c0_45], %118 {strides = array<i32>} : memref<8x1xf32, #tpu.memory_space<vmem>>, vector<8x1xf32>,
    return
  }
}

</mosaic_0001>

<llo_original>
// kernel: point_hazard_forward.1
$region0: #{point_hazard_forward.1}
  #allocation0 [shape = 'u32[]', space=smem, size = 0x4, offset = 0x4, fixed_abs, tag = 'smem constant byte address 0x4 - core index']
  #allocation1 [shape = 'u32[144,128]{1,0:T(1,128)}', space=vmem, size = 0x12000, scoped, tag = 'internal scratch']
  %s0 = inlined_call_operand.vmem [shape: f32[8,32], index: 0, kind: input, shape index: {}]
  %s1 = inlined_call_operand.vmem [shape: f32[32,32], index: 1, kind: input, shape index: {}]
  %s2 = inlined_call_operand.vmem [shape: f32[32,16], index: 2, kind: input, shape index: {}]
  %s3 = inlined_call_operand.vmem [shape: f32[16,1], index: 3, kind: input, shape index: {}]
  %s4 = inlined_call_operand.vmem [shape: f32[6,128], index: 4, kind: input, shape index: {}]
  %s5 = inlined_call_operand.vmem [shape: f32[8,1], index: 5, kind: output, shape index: {}]
  %s6 = sld [smem:[#allocation0]]
  $region30: #{point_hazard_forward.1} parent=0
    _
  %s8 = ssub.s32 1, %s6
  %s9 = scalar_select 0, %s8, %s6
  // Predicated region
  $region2: #{point_hazard_forward.1} parent=0 // pred_check
    _
  $region3: #{point_hazard_forward.1} parent=0 // pred_check_branch
    %11 = sbr.rel (0) target = $region5
  $region4: #{point_hazard_forward.1} parent=0 // pred_region
    _
  $region5: #{point_hazard_forward.1} parent=0 // pred_fallthru
    _
  // Predicated region
  $region6: #{point_hazard_forward.1} parent=0 // pred_check
    _
  $region7: #{point_hazard_forward.1} parent=0 // pred_check_branch
    %13 = sbr.rel (0) target = $region9
  $region8: #{point_hazard_forward.1} parent=0 // pred_region
    _
  $region9: #{point_hazard_forward.1} parent=0 // pred_fallthru
    _
  // Predicated region
  $region10: #{point_hazard_forward.1} parent=0 // pred_check
    _
  $region11: #{point_hazard_forward.1} parent=0 // pred_check_branch
    %15 = sbr.rel (0) target = $region13
  $region12: #{point_hazard_forward.1} parent=0 // pred_region
    _
  $region13: #{point_hazard_forward.1} parent=0 // pred_fallthru
    _
  // Predicated region
  $region14: #{point_hazard_forward.1} parent=0 // pred_check
    _
  $region15: #{point_hazard_forward.1} parent=0 // pred_check_branch
    %17 = sbr.rel (0) target = $region17
  $region16: #{point_hazard_forward.1} parent=0 // pred_region
    _
  $region17: #{point_hazard_forward.1} parent=0 // pred_fallthru
    _
  // Predicated region
  $region18: #{point_hazard_forward.1} parent=0 // pred_check
    _
  $region19: #{point_hazard_forward.1} parent=0 // pred_check_branch
    %19 = sbr.rel (0) target = $region21
  $region20: #{point_hazard_forward.1} parent=0 // pred_region
    _
  $region21: #{point_hazard_forward.1} parent=0 // pred_fallthru
    _
  %v20 = vld [vmem:[%s4] sm:$0x3f]
  %v21 = vld [vmem:[%s0] sm:$0xff]
  %v22 = vld [vmem:[%s1] sm:$0xff]
  %v23 = vld [vmem:[%s1 + $0x8] sm:$0xff]
  %v24 = vld [vmem:[%s1 + $0x10] sm:$0xff]
  %v25 = vld [vmem:[%s1 + $0x18] sm:$0xff]
  %vm26 = vcmask 261120
  %v28 = vsel %vm26, %v21, 0
  %30 = vmatprep.subr.mxu0 0.0
  %v31 = vand.u32 %v22, 4294901760
  %32 = vmatpush1.msra.mxu0 %v31
  %33 = vmatprep.subr.mxu0 0.0
  %v34 = vand.u32 %v23, 4294901760
  %35 = vmatpush1.msra.mxu0 %v34
  %36 = vmatprep.subr.mxu0 0.0
  %v37 = vand.u32 %v24, 4294901760
  %38 = vmatpush1.msra.mxu0 %v37
  %39 = vmatprep.subr.mxu0 0.0
  %v40 = vand.u32 %v25, 4294901760
  %41 = vmatpush1.msra.mxu0 %v40
  %42 = vmatprep.subr.mxu0 0.0
  %43 = vmatpush1.msra.mxu0 0.0
  %44 = vmatprep.subr.mxu0 0.0
  %45 = vmatpush1.msra.mxu0 0.0
  %46 = vmatprep.subr.mxu0 0.0
  %47 = vmatpush1.msra.mxu0 0.0
  %48 = vmatprep.subr.mxu0 0.0
  %49 = vmatpush1.msra.mxu0 0.0
  %50 = vmatprep.subr.mxu0 0.0
  %51 = vmatpush1.msra.mxu0 0.0
  %52 = vmatprep.subr.mxu0 0.0
  %53 = vmatpush1.msra.mxu0 0.0
  %54 = vmatprep.subr.mxu0 0.0
  %55 = vmatpush1.msra.mxu0 0.0
  %56 = vmatprep.subr.mxu0 0.0
  %57 = vmatpush1.msra.mxu0 0.0
  %58 = vmatprep.subr.mxu0 0.0
  %59 = vmatpush1.msra.mxu0 0.0
  %60 = vmatprep.subr.mxu0 0.0
  %61 = vmatpush1.msra.mxu0 0.0
  %62 = vmatprep.subr.mxu0 0.0
  %63 = vmatpush1.msra.mxu0 0.0
  %64 = vmatprep.subr.mxu0 0.0
  %65 = vmatpush1.msra.mxu0 0.0
  %66 = vmatprep.subr.mxu0 0.0
  %67 = vmatpush1.msra.mxu0 0.0
  %68 = vmatprep.subr.mxu0 0.0
  %69 = vmatpush1.msra.mxu0 0.0
  %70 = vmatprep.subr.mxu0 0.0
  %71 = vmatpush1.msra.mxu0 0.0
  %72 = vmatprep.subr.mxu0 0.0
  %73 = vmatpush1.msra.mxu0 0.0
  %74 = vmatprep.subr.mxu0 0.0
  %75 = vmatpush1.msra.mxu0 0.0
  %76 = vmatprep.subr.mxu0 0.0
  %77 = vmatpush1.msra.mxu0 0.0
  %78 = vmatprep.subr.mxu0 0.0
  %79 = vmatpush1.msra.mxu0 0.0
  %80 = vmatprep.subr.mxu0 0.0
  %81 = vmatpush1.msra.mxu0 0.0
  %82 = vmatprep.subr.mxu0 0.0
  %83 = vmatpush1.msra.mxu0 0.0
  %84 = vmatprep.subr.mxu0 0.0
  %85 = vmatpush1.msra.mxu0 0.0
  %86 = vmatprep.subr.mxu0 0.0
  %87 = vmatpush1.msra.mxu0 0.0
  %88 = vmatprep.subr.mxu0 0.0
  %89 = vmatpush1.msra.mxu0 0.0
  %90 = vmatprep.subr.mxu0 0.0
  %91 = vmatpush1.msra.mxu0 0.0
  %92 = vmatprep.subr.mxu0 0.0
  %93 = vmatpush1.msra.mxu0 0.0
  %94 = vmatprep.subr.mxu0 0.0
  %95 = vmatpush1.msra.mxu0 0.0
  %96 = vmatprep.subr.mxu0 0.0
  %97 = vmatpush1.msra.mxu0 0.0
  %98 = vmatprep.mubr.f32.mxu0 0.0
  %v99 = vand.u32 %v28, 4294901760
  %v100 = vsub.f32 %v28, %v99
  %v101 = vand.u32 %v100, 4294901760
  %v102 = vsub.f32 %v100, %v101
  %v103 = vand.u32 %v102, 4294901760
  %104 = vmatmul.mubr.f32.gmra.mrb[0].mxu0 %v103
  %v105 = vpop.f32.mrb[0].mxu0
  %v106 = vadd.f32 0.0, %v105
  %v107 = vpop.f32.mrb[0].mxu0
  %108 = vdwg.mxu0
  %109 = vmatprep.subr.mxu0 0.0
  %v110 = vand.u32 %v22, 4294901760
  %v111 = vsub.f32 %v22, %v110
  %v112 = vand.u32 %v111, 4294901760
  %v113 = vsub.f32 %v111, %v112
  %v114 = vand.u32 %v113, 4294901760
  %115 = vmatpush1.msra.mxu0 %v114
  %116 = vmatprep.subr.mxu0 0.0
  %v117 = vand.u32 %v23, 4294901760
  %v118 = vsub.f32 %v23, %v117
  %v119 = vand.u32 %v118, 4294901760
  %v120 = vsub.f32 %v118, %v119
  %v121 = vand.u32 %v120, 4294901760
  %122 = vmatpush1.msra.mxu0 %v121
  %123 = vmatprep.subr.mxu0 0.0
  %v124 = vand.u32 %v24, 4294901760
  %v125 = vsub.f32 %v24, %v124
  %v126 = vand.u32 %v125, 4294901760
  %v127 = vsub.f32 %v125, %v126
  %v128 = vand.u32 %v127, 4294901760
  %129 = vmatpush1.msra.mxu0 %v128
  %130 = vmatprep.subr.mxu0 0.0
  %v131 = vand.u32 %v25, 4294901760
  %v132 = vsub.f32 %v25, %v131
  %v133 = vand.u32 %v132, 4294901760
  %v134 = vsub.f32 %v132, %v133
  %v135 = vand.u32 %v134, 4294901760
  %136 = vmatpush1.msra.mxu0 %v135
  %137 = vmatprep.subr.mxu0 0.0
  %138 = vmatpush1.msra.mxu0 0.0
  %139 = vmatprep.subr.mxu0 0.0
  %140 = vmatpush1.msra.mxu0 0.0
  %141 = vmatprep.subr.mxu0 0.0
  %142 = vmatpush1.msra.mxu0 0.0
  %143 = vmatprep.subr.mxu0 0.0
  %144 = vmatpush1.msra.mxu0 0.0
  %145 = vmatprep.subr.mxu0 0.0
  %146 = vmatpush1.msra.mxu0 0.0
  %147 = vmatprep.subr.mxu0 0.0
  %148 = vmatpush1.msra.mxu0 0.0
  %149 = vmatprep.subr.mxu0 0.0
  %150 = vmatpush1.msra.mxu0 0.0
  %151 = vmatprep.subr.mxu0 0.0
  %152 = vmatpush1.msra.mxu0 0.0
  %153 = vmatprep.subr.mxu0 0.0
  %154 = vmatpush1.msra.mxu0 0.0
  %155 = vmatprep.subr.mxu0 0.0
  %156 = vmatpush1.msra.mxu0 0.0
  %157 = vmatprep.subr.mxu0 0.0
  %158 = vmatpush1.msra.mxu0 0.0
  %159 = vmatprep.subr.mxu0 0.0
  %160 = vmatpush1.msra.mxu0 0.0
  %161 = vmatprep.subr.mxu0 0.0
  %162 = vmatpush1.msra.mxu0 0.0
  %163 = vmatprep.subr.mxu0 0.0
  %164 = vmatpush1.msra.mxu0 0.0
  %165 = vmatprep.subr.mxu0 0.0
  %166 = vmatpush1.msra.mxu0 0.0
  %167 = vmatprep.subr.mxu0 0.0
  %168 = vmatpush1.msra.mxu0 0.0
  %169 = vmatprep.subr.mxu0 0.0
  %170 = vmatpush1.msra.mxu0 0.0
  %171 = vmatprep.subr.mxu0 0.0
  %172 = vmatpush1.msra.mxu0 0.0
  %173 = vmatprep.subr.mxu0 0.0
  %174 = vmatpush1.msra.mxu0 0.0
  %175 = vmatprep.subr.mxu0 0.0
  %176 = vmatpush1.msra.mxu0 0.0
  %177 = vmatprep.subr.mxu0 0.0
  %178 = vmatpush1.msra.mxu0 0.0
  %179 = vmatprep.subr.mxu0 0.0
  %180 = vmatpush1.msra.mxu0 0.0
  %181 = vmatprep.subr.mxu0 0.0
  %182 = vmatpush1.msra.mxu0 0.0
  %183 = vmatprep.subr.mxu0 0.0
  %184 = vmatpush1.msra.mxu0 0.0
  %185 = vmatprep.subr.mxu0 0.0
  %186 = vmatpush1.msra.mxu0 0.0
  %187 = vmatprep.subr.mxu0 0.0
  %188 = vmatpush1.msra.mxu0 0.0
  %189 = vmatprep.subr.mxu0 0.0
  %190 = vmatpush1.msra.mxu0 0.0
  %191 = vmatprep.subr.mxu0 0.0
  %192 = vmatpush1.msra.mxu0 0.0
  %193 = vmatprep.mubr.f32.mxu0 0.0
  %v194 = vand.u32 %v28, 4294901760
  %195 = vmatmul.mubr.f32.gmra.mrb[0].mxu0 %v194
  %v196 = vpop.f32.mrb[0].mxu0
  %v197 = vadd.f32 %v106, %v196
  %v198 = vpop.f32.mrb[0].mxu0
  %199 = vdwg.mxu0
  %200 = vmatprep.subr.mxu0 0.0
  %v201 = vand.u32 %v22, 4294901760
  %v202 = vsub.f32 %v22, %v201
  %203 = vmatpush1.msra.mxu0 %v202
  %204 = vmatprep.subr.mxu0 0.0
  %v205 = vand.u32 %v23, 4294901760
  %v206 = vsub.f32 %v23, %v205
  %207 = vmatpush1.msra.mxu0 %v206
  %208 = vmatprep.subr.mxu0 0.0
  %v209 = vand.u32 %v24, 4294901760
  %v210 = vsub.f32 %v24, %v209
  %211 = vmatpush1.msra.mxu0 %v210
  %212 = vmatprep.subr.mxu0 0.0
  %v213 = vand.u32 %v25, 4294901760
  %v214 = vsub.f32 %v25, %v213
  %215 = vmatpush1.msra.mxu0 %v214
  %216 = vmatprep.subr.mxu0 0.0
  %217 = vmatpush1.msra.mxu0 0.0
  %218 = vmatprep.subr.mxu0 0.0
  %219 = vmatpush1.msra.mxu0 0.0
  %220 = vmatprep.subr.mxu0 0.0
  %221 = vmatpush1.msra.mxu0 0.0
  %222 = vmatprep.subr.mxu0 0.0
  %223 = vmatpush1.msra.mxu0 0.0
  %224 = vmatprep.subr.mxu0 0.0
  %225 = vmatpush1.msra.mxu0 0.0
  %226 = vmatprep.subr.mxu0 0.0
  %227 = vmatpush1.msra.mxu0 0.0
  %228 = vmatprep.subr.mxu0 0.0
  %229 = vmatpush1.msra.mxu0 0.0
  %230 = vmatprep.subr.mxu0 0.0
  %231 = vmatpush1.msra.mxu0 0.0
  %232 = vmatprep.subr.mxu0 0.0
  %233 = vmatpush1.msra.mxu0 0.0
  %234 = vmatprep.subr.mxu0 0.0
  %235 = vmatpush1.msra.mxu0 0.0
  %236 = vmatprep.subr.mxu0 0.0
  %237 = vmatpush1.msra.mxu0 0.0
  %238 = vmatprep.subr.mxu0 0.0
  %239 = vmatpush1.msra.mxu0 0.0
  %240 = vmatprep.subr.mxu0 0.0
  %241 = vmatpush1.msra.mxu0 0.0
  %242 = vmatprep.subr.mxu0 0.0
  %243 = vmatpush1.msra.mxu0 0.0
  %244 = vmatprep.subr.mxu0 0.0
  %245 = vmatpush1.msra.mxu0 0.0
  %246 = vmatprep.subr.mxu0 0.0
  %247 = vmatpush1.msra.mxu0 0.0
  %248 = vmatprep.subr.mxu0 0.0
  %249 = vmatpush1.msra.mxu0 0.0
  %250 = vmatprep.subr.mxu0 0.0
  %251 = vmatpush1.msra.mxu0 0.0
  %252 = vmatprep.subr.mxu0 0.0
  %253 = vmatpush1.msra.mxu0 0.0
  %254 = vmatprep.subr.mxu0 0.0
  %255 = vmatpush1.msra.mxu0 0.0
  %256 = vmatprep.subr.mxu0 0.0
  %257 = vmatpush1.msra.mxu0 0.0
  %258 = vmatprep.subr.mxu0 0.0
  %259 = vmatpush1.msra.mxu0 0.0
  %260 = vmatprep.subr.mxu0 0.0
  %261 = vmatpush1.msra.mxu0 0.0
  %262 = vmatprep.subr.mxu0 0.0
  %263 = vmatpush1.msra.mxu0 0.0
  %264 = vmatprep.subr.mxu0 0.0
  %265 = vmatpush1.msra.mxu0 0.0
  %266 = vmatprep.subr.mxu0 0.0
  %267 = vmatpush1.msra.mxu0 0.0
  %268 = vmatprep.subr.mxu0 0.0
  %269 = vmatpush1.msra.mxu0 0.0
  %270 = vmatprep.subr.mxu0 0.0
  %271 = vmatpush1.msra.mxu0 0.0
  %272 = vmatprep.mubr.f32.mxu0 0.0
  %v273 = vand.u32 %v28, 4294901760
  %v274 = vsub.f32 %v28, %v273
  %275 = vmatmul.mubr.f32.gmra.mrb[0].mxu0 %v274
  %v276 = vpop.f32.mrb[0].mxu0
  %v277 = vadd.f32 %v197, %v276
  %v278 = vpop.f32.mrb[0].mxu0
  %279 = vdwg.mxu0
  %280 = vmatprep.subr.mxu0 0.0
  %v281 = vand.u32 %v22, 4294901760
  %282 = vmatpush1.msra.mxu0 %v281
  %283 = vmatprep.subr.mxu0 0.0
  %v284 = vand.u32 %v23, 4294901760
  %285 = vmatpush1.msra.mxu0 %v284
  %286 = vmatprep.subr.mxu0 0.0
  %v287 = vand.u32 %v24, 4294901760
  %288 = vmatpush1.msra.mxu0 %v287
  %289 = vmatprep.subr.mxu0 0.0
  %v290 = vand.u32 %v25, 4294901760
  %291 = vmatpush1.msra.mxu0 %v290
  %292 = vmatprep.subr.mxu0 0.0
  %293 = vmatpush1.msra.mxu0 0.0
  %294 = vmatprep.subr.mxu0 0.0
  %295 = vmatpush1.msra.mxu0 0.0
  %296 = vmatprep.subr.mxu0 0.0
  %297 = vmatpush1.msra.mxu0 0.0
  %298 = vmatprep.subr.mxu0 0.0
  %299 = vmatpush1.msra.mxu0 0.0
  %300 = vmatprep.subr.mxu0 0.0
  %301 = vmatpush1.msra.mxu0 0.0
  %302 = vmatprep.subr.mxu0 0.0
  %303 = vmatpush1.msra.mxu0 0.0
  %304 = vmatprep.subr.mxu0 0.0
  %305 = vmatpush1.msra.mxu0 0.0
  %306 = vmatprep.subr.mxu0 0.0
  %307 = vmatpush1.msra.mxu0 0.0
  %308 = vmatprep.subr.mxu0 0.0
  %309 = vmatpush1.msra.mxu0 0.0
  %310 = vmatprep.subr.mxu0 0.0
  %311 = vmatpush1.msra.mxu0 0.0
  %312 = vmatprep.subr.mxu0 0.0
  %313 = vmatpush1.msra.mxu0 0.0
  %314 = vmatprep.subr.mxu0 0.0
  %315 = vmatpush1.msra.mxu0 0.0
  %316 = vmatprep.subr.mxu0 0.0
  %317 = vmatpush1.msra.mxu0 0.0
  %318 = vmatprep.subr.mxu0 0.0
  %319 = vmatpush1.msra.mxu0 0.0
  %320 = vmatprep.subr.mxu0 0.0
  %321 = vmatpush1.msra.mxu0 0.0
  %322 = vmatprep.subr.mxu0 0.0
  %323 = vmatpush1.msra.mxu0 0.0
  %324 = vmatprep.subr.mxu0 0.0
  %325 = vmatpush1.msra.mxu0 0.0
  %326 = vmatprep.subr.mxu0 0.0
  %327 = vmatpush1.msra.mxu0 0.0
  %328 = vmatprep.subr.mxu0 0.0
  %329 = vmatpush1.msra.mxu0 0.0
  %330 = vmatprep.subr.mxu0 0.0
  %331 = vmatpush1.msra.mxu0 0.0
  %332 = vmatprep.subr.mxu0 0.0
  %333 = vmatpush1.msra.mxu0 0.0
  %334 = vmatprep.subr.mxu0 0.0
  %335 = vmatpush1.msra.mxu0 0.0
  %336 = vmatprep.subr.mxu0 0.0
  %337 = vmatpush1.msra.mxu0 0.0
  %338 = vmatprep.subr.mxu0 0.0
  %339 = vmatpush1.msra.mxu0 0.0
  %340 = vmatprep.subr.mxu0 0.0
  %341 = vmatpush1.msra.mxu0 0.0
  %342 = vmatprep.subr.mxu0 0.0
  %343 = vmatpush1.msra.mxu0 0.0
  %344 = vmatprep.subr.mxu0 0.0
  %345 = vmatpush1.msra.mxu0 0.0
  %346 = vmatprep.subr.mxu0 0.0
  %347 = vmatpush1.msra.mxu0 0.0
  %348 = vmatprep.mubr.f32.mxu0 0.0
  %v349 = vand.u32 %v28, 4294901760
  %v350 = vsub.f32 %v28, %v349
  %v351 = vand.u32 %v350, 4294901760
  %352 = vmatmul.mubr.f32.gmra.mrb[0].mxu0 %v351
  %v353 = vpop.f32.mrb[0].mxu0
  %v354 = vadd.f32 %v277, %v353
  %v355 = vpop.f32.mrb[0].mxu0
  %356 = vdwg.mxu0
  %357 = vmatprep.subr.mxu0 0.0
  %v358 = vand.u32 %v22, 4294901760
  %v359 = vsub.f32 %v22, %v358
  %v360 = vand.u32 %v359, 4294901760
  %361 = vmatpush1.msra.mxu0 %v360
  %362 = vmatprep.subr.mxu0 0.0
  %v363 = vand.u32 %v23, 4294901760
  %v364 = vsub.f32 %v23, %v363
  %v365 = vand.u32 %v364, 4294901760
  %366 = vmatpush1.msra.mxu0 %v365
  %367 = vmatprep.subr.mxu0 0.0
  %v368 = vand.u32 %v24, 4294901760
  %v369 = vsub.f32 %v24, %v368
  %v370 = vand.u32 %v369, 4294901760
  %371 = vmatpush1.msra.mxu0 %v370
  %372 = vmatprep.subr.mxu0 0.0
  %v373 = vand.u32 %v25, 4294901760
  %v374 = vsub.f32 %v25, %v373
  %v375 = vand.u32 %v374, 4294901760
  %376 = vmatpush1.msra.mxu0 %v375
  %377 = vmatprep.subr.mxu0 0.0
  %378 = vmatpush1.msra.mxu0 0.0
  %379 = vmatprep.subr.mxu0 0.0
  %380 = vmatpush1.msra.mxu0 0.0
  %381 = vmatprep.subr.mxu0 0.0
  %382 = vmatpush1.msra.mxu0 0.0
  %383 = vmatprep.subr.mxu0 0.0
  %384 = vmatpush1.msra.mxu0 0.0
  %385 = vmatprep.subr.mxu0 0.0
  %386 = vmatpush1.msra.mxu0 0.0
  %387 = vmatprep.subr.mxu0 0.0
  %388 = vmatpush1.msra.mxu0 0.0
  %389 = vmatprep.subr.mxu0 0.0
  %390 = vmatpush1.msra.mxu0 0.0
  %391 = vmatprep.subr.mxu0 0.0
  %392 = vmatpush1.msra.mxu0 0.0
  %393 = vmatprep.subr.mxu0 0.0
  %394 = vmatpush1.msra.mxu0 0.0
  %395 = vmatprep.subr.mxu0 0.0
  %396 = vmatpush1.msra.mxu0 0.0
  %397 = vmatprep.subr.mxu0 0.0
  %398 = vmatpush1.msra.mxu0 0.0
  %399 = vmatprep.subr.mxu0 0.0
  %400 = vmatpush1.msra.mxu0 0.0
  %401 = vmatprep.subr.mxu0 0.0
  %402 = vmatpush1.msra.mxu0 0.0
  %403 = vmatprep.subr.mxu0 0.0
  %404 = vmatpush1.msra.mxu0 0.0
  %405 = vmatprep.subr.mxu0 0.0
  %406 = vmatpush1.msra.mxu0 0.0
  %407 = vmatprep.subr.mxu0 0.0
  %408 = vmatpush1.msra.mxu0 0.0
  %409 = vmatprep.subr.mxu0 0.0
  %410 = vmatpush1.msra.mxu0 0.0
  %411 = vmatprep.subr.mxu0 0.0
  %412 = vmatpush1.msra.mxu0 0.0
  %413 = vmatprep.subr.mxu0 0.0
  %414 = vmatpush1.msra.mxu0 0.0
  %415 = vmatprep.subr.mxu0 0.0
  %416 = vmatpush1.msra.mxu0 0.0
  %417 = vmatprep.subr.mxu0 0.0
  %418 = vmatpush1.msra.mxu0 0.0
  %419 = vmatprep.subr.mxu0 0.0
  %420 = vmatpush1.msra.mxu0 0.0
  %421 = vmatprep.subr.mxu0 0.0
  %422 = vmatpush1.msra.mxu0 0.0
  %423 = vmatprep.subr.mxu0 0.0
  %424 = vmatpush1.msra.mxu0 0.0
  %425 = vmatprep.subr.mxu0 0.0
  %426 = vmatpush1.msra.mxu0 0.0
  %427 = vmatprep.subr.mxu0 0.0
  %428 = vmatpush1.msra.mxu0 0.0
  %429 = vmatprep.subr.mxu0 0.0
  %430 = vmatpush1.msra.mxu0 0.0
  %431 = vmatprep.subr.mxu0 0.0
  %432 = vmatpush1.msra.mxu0 0.0
  %433 = vmatprep.mubr.f32.mxu0 0.0
  %v434 = vand.u32 %v28, 4294901760
  %435 = vmatmul.mubr.f32.gmra.mrb[0].mxu0 %v434
  %v436 = vpop.f32.mrb[0].mxu0
  %v437 = vadd.f32 %v354, %v436
  %v438 = vpop.f32.mrb[0].mxu0
  %439 = vdwg.mxu0
  %440 = vmatprep.subr.mxu0 0.0
  %v441 = vand.u32 %v22, 4294901760
  %442 = vmatpush1.msra.mxu0 %v441
  %443 = vmatprep.subr.mxu0 0.0
  %v444 = vand.u32 %v23, 4294901760
  %445 = vmatpush1.msra.mxu0 %v444
  %446 = vmatprep.subr.mxu0 0.0
  %v447 = vand.u32 %v24, 4294901760
  %448 = vmatpush1.msra.mxu0 %v447
  %449 = vmatprep.subr.mxu0 0.0
  %v450 = vand.u32 %v25, 4294901760
  %451 = vmatpush1.msra.mxu0 %v450
  %452 = vmatprep.subr.mxu0 0.0
  %453 = vmatpush1.msra.mxu0 0.0
  %454 = vmatprep.subr.mxu0 0.0
  %455 = vmatpush1.msra.mxu0 0.0
  %456 = vmatprep.subr.mxu0 0.0
  %457 = vmatpush1.msra.mxu0 0.0
  %458 = vmatprep.subr.mxu0 0.0
  %459 = vmatpush1.msra.mxu0 0.0
  %460 = vmatprep.subr.mxu0 0.0
  %461 = vmatpush1.msra.mxu0 0.0
  %462 = vmatprep.subr.mxu0 0.0
  %463 = vmatpush1.msra.mxu0 0.0
  %464 = vmatprep.subr.mxu0 0.0
  %465 = vmatpush1.msra.mxu0 0.0
  %466 = vmatprep.subr.mxu0 0.0
  %467 = vmatpush1.msra.mxu0 0.0
  %468 = vmatprep.subr.mxu0 0.0
  %469 = vmatpush1.msra.mxu0 0.0
  %470 = vmatprep.subr.mxu0 0.0
  %471 = vmatpush1.msra.mxu0 0.0
  %472 = vmatprep.subr.mxu0 0.0
  %473 = vmatpush1.msra.mxu0 0.0
  %474 = vmatprep.subr.mxu0 0.0
  %475 = vmatpush1.msra.mxu0 0.0
  %476 = vmatprep.subr.mxu0 0.0
  %477 = vmatpush1.msra.mxu0 0.0
  %478 = vmatprep.subr.mxu0 0.0
  %479 = vmatpush1.msra.mxu0 0.0
  %480 = vmatprep.subr.mxu0 0.0
  %481 = vmatpush1.msra.mxu0 0.0
  %482 = vmatprep.subr.mxu0 0.0
  %483 = vmatpush1.msra.mxu0 0.0
  %484 = vmatprep.subr.mxu0 0.0
  %485 = vmatpush1.msra.mxu0 0.0
  %486 = vmatprep.subr.mxu0 0.0
  %487 = vmatpush1.msra.mxu0 0.0
  %488 = vmatprep.subr.mxu0 0.0
  %489 = vmatpush1.msra.mxu0 0.0
  %490 = vmatprep.subr.mxu0 0.0
  %491 = vmatpush1.msra.mxu0 0.0
  %492 = vmatprep.subr.mxu0 0.0
  %493 = vmatpush1.msra.mxu0 0.0
  %494 = vmatprep.subr.mxu0 0.0
  %495 = vmatpush1.msra.mxu0 0.0
  %496 = vmatprep.subr.mxu0 0.0
  %497 = vmatpush1.msra.mxu0 0.0
  %498 = vmatprep.subr.mxu0 0.0
  %499 = vmatpush1.msra.mxu0 0.0
  %500 = vmatprep.subr.mxu0 0.0
  %501 = vmatpush1.msra.mxu0 0.0
  %502 = vmatprep.subr.mxu0 0.0
  %503 = vmatpush1.msra.mxu0 0.0
  %504 = vmatprep.subr.mxu0 0.0
  %505 = vmatpush1.msra.mxu0 0.0
  %506 = vmatprep.subr.mxu0 0.0
  %507 = vmatpush1.msra.mxu0 0.0
  %508 = vmatprep.mubr.f32.mxu0 0.0
  %v509 = vand.u32 %v28, 4294901760
  %510 = vmatmul.mubr.f32.gmra.mrb[0].mxu0 %v509
  %v511 = vpop.f32.mrb[0].mxu0
  %v512 = vadd.f32 %v437, %v511
  %v513 = vpop.f32.mrb[0].mxu0
  %514 = vdwg.mxu0
  %v515 = vsel %vm26, %v512, 0.0
  %v516 = vrot.slane %v515, 4
  %v517 = vadd.f32 %v515, %v516
  %v518 = vrot.slane %v517, 2
  %v519 = vadd.f32 %v517, %v518
  %v520 = vrot.slane %v519, 1
  %v521 = vadd.f32 %v519, %v520
  %v522 = vmul.f32 %v521, 0.125
  %v523 = vmul.f32 %v512, %v512
  %v524 = vsel %vm26, %v523, 0.0
  %v525 = vrot.slane %v524, 4
  %v526 = vadd.f32 %v524, %v525
  %v527 = vrot.slane %v526, 2
  %v528 = vadd.f32 %v526, %v527
  %v529 = vrot.slane %v528, 1
  %v530 = vadd.f32 %v528, %v529
  %v531 = vmul.f32 %v530, 0.125
  %v532 = vmul.f32 %v522, %v522
  %v533 = vsub.f32 %v531, %v532
  %v534 = vmax.f32 %v533, 0.0
  %v535 = vadd.f32 %v534, 1e-05
  %v536 = vrsqrt.pop %v535
  %v537 = vmul.f32 %v20, %v536
  %v538 = vsub.f32 %v512, %v522
  %v539 = vlaneseq
  %v540 = vshrl.u32 %v539, 7
  %v541 = vsub.s32 0, %v540
  %v542 = vrot.slane %v537, %v541
  %v543 = vmul.f32 %v538, %v542
  %v544 = vlaneseq
  %v545 = vshrl.u32 %v544, 7
  %v546 = vsub.s32 1, %v545
  %v547 = vrot.slane %v20, %v546
  %v548 = vadd.f32 %v543, %v547
  %vm549 = vcmp.gt.f32.partialorder %v548, 0.0
  %v550 = vmin.f32 %v548, 0.0
  %v551 = vmul.f32 %v550, 1.442695
  %v552 = vpow.pop %v551
  %v553 = vsub.f32 %v552, 1.0
  %v554 = vmul.f32 %v553, 1.6732632
  %v555 = vsel %vm549, %v548, %v554
  %v556 = vmul.f32 %v555, 1.050701
  %v557 = vld [vmem:[%s2] sm:$0xff]
  %v558 = vld [vmem:[%s2 + $0x8] sm:$0xff]
  %v559 = vld [vmem:[%s2 + $0x10] sm:$0xff]
  %v560 = vld [vmem:[%s2 + $0x18] sm:$0xff]
  %v562 = vsel %vm26, %v556, 0
  %564 = vmatprep.subr.mxu0 0.0
  %v565 = vand.u32 %v557, 4294901760
  %566 = vmatpush1.msra.mxu0 %v565
  %567 = vmatprep.subr.mxu0 0.0
  %v568 = vand.u32 %v558, 4294901760
  %569 = vmatpush1.msra.mxu0 %v568
  %570 = vmatprep.subr.mxu0 0.0
  %v571 = vand.u32 %v559, 4294901760
  %572 = vmatpush1.msra.mxu0 %v571
  %573 = vmatprep.subr.mxu0 0.0
  %v574 = vand.u32 %v560, 4294901760
  %575 = vmatpush1.msra.mxu0 %v574
  %576 = vmatprep.subr.mxu0 0.0
  %577 = vmatpush1.msra.mxu0 0.0
  %578 = vmatprep.subr.mxu0 0.0
  %579 = vmatpush1.msra.mxu0 0.0
  %580 = vmatprep.subr.mxu0 0.0
  %581 = vmatpush1.msra.mxu0 0.0
  %582 = vmatprep.subr.mxu0 0.0
  %583 = vmatpush1.msra.mxu0 0.0
  %584 = vmatprep.subr.mxu0 0.0
  %585 = vmatpush1.msra.mxu0 0.0
  %586 = vmatprep.subr.mxu0 0.0
  %587 = vmatpush1.msra.mxu0 0.0
  %588 = vmatprep.subr.mxu0 0.0
  %589 = vmatpush1.msra.mxu0 0.0
  %590 = vmatprep.subr.mxu0 0.0
  %591 = vmatpush1.msra.mxu0 0.0
  %592 = vmatprep.subr.mxu0 0.0
  %593 = vmatpush1.msra.mxu0 0.0
  %594 = vmatprep.subr.mxu0 0.0
  %595 = vmatpush1.msra.mxu0 0.0
  %596 = vmatprep.subr.mxu0 0.0
  %597 = vmatpush1.msra.mxu0 0.0
  %598 = vmatprep.subr.mxu0 0.0
  %599 = vmatpush1.msra.mxu0 0.0
  %600 = vmatprep.subr.mxu0 0.0
  %601 = vmatpush1.msra.mxu0 0.0
  %602 = vmatprep.subr.mxu0 0.0
  %603 = vmatpush1.msra.mxu0 0.0
  %604 = vmatprep.subr.mxu0 0.0
  %605 = vmatpush1.msra.mxu0 0.0
  %606 = vmatprep.subr.mxu0 0.0
  %607 = vmatpush1.msra.mxu0 0.0
  %608 = vmatprep.subr.mxu0 0.0
  %609 = vmatpush1.msra.mxu0 0.0
  %610 = vmatprep.subr.mxu0 0.0
  %611 = vmatpush1.msra.mxu0 0.0
  %612 = vmatprep.subr.mxu0 0.0
  %613 = vmatpush1.msra.mxu0 0.0
  %614 = vmatprep.subr.mxu0 0.0
  %615 = vmatpush1.msra.mxu0 0.0
  %616 = vmatprep.subr.mxu0 0.0
  %617 = vmatpush1.msra.mxu0 0.0
  %618 = vmatprep.subr.mxu0 0.0
  %619 = vmatpush1.msra.mxu0 0.0
  %620 = vmatprep.subr.mxu0 0.0
  %621 = vmatpush1.msra.mxu0 0.0
  %622 = vmatprep.subr.mxu0 0.0
  %623 = vmatpush1.msra.mxu0 0.0
  %624 = vmatprep.subr.mxu0 0.0
  %625 = vmatpush1.msra.mxu0 0.0
  %626 = vmatprep.subr.mxu0 0.0
  %627 = vmatpush1.msra.mxu0 0.0
  %628 = vmatprep.subr.mxu0 0.0
  %629 = vmatpush1.msra.mxu0 0.0
  %630 = vmatprep.subr.mxu0 0.0
  %631 = vmatpush1.msra.mxu0 0.0
  %632 = vmatprep.mubr.f32.mxu0 0.0
  %v633 = vand.u32 %v562, 4294901760
  %v634 = vsub.f32 %v562, %v633
  %v635 = vand.u32 %v634, 4294901760
  %v636 = vsub.f32 %v634, %v635
  %v637 = vand.u32 %v636, 4294901760
  %638 = vmatmul.mubr.f32.gmra.mrb[0].mxu0 %v637
  %v639 = vpop.f32.mrb[0].mxu0
  %v640 = vadd.f32 0.0, %v639
  %v641 = vpop.f32.mrb[0].mxu0
  %642 = vdwg.mxu0
  %643 = vmatprep.subr.mxu0 0.0
  %v644 = vand.u32 %v557, 4294901760
  %v645 = vsub.f32 %v557, %v644
  %v646 = vand.u32 %v645, 4294901760
  %v647 = vsub.f32 %v645, %v646
  %v648 = vand.u32 %v647, 4294901760
  %649 = vmatpush1.msra.mxu0 %v648
  %650 = vmatprep.subr.mxu0 0.0
  %v651 = vand.u32 %v558, 4294901760
  %v652 = vsub.f32 %v558, %v651
  %v653 = vand.u32 %v652, 4294901760
  %v654 = vsub.f32 %v652, %v653
  %v655 = vand.u32 %v654, 4294901760
  %656 = vmatpush1.msra.mxu0 %v655
  %657 = vmatprep.subr.mxu0 0.0
  %v658 = vand.u32 %v559, 4294901760
  %v659 = vsub.f32 %v559, %v658
  %v660 = vand.u32 %v659, 4294901760
  %v661 = vsub.f32 %v659, %v660
  %v662 = vand.u32 %v661, 4294901760
  %663 = vmatpush1.msra.mxu0 %v662
  %664 = vmatprep.subr.mxu0 0.0
  %v665 = vand.u32 %v560, 4294901760
  %v666 = vsub.f32 %v560, %v665
  %v667 = vand.u32 %v666, 4294901760
  %v668 = vsub.f32 %v666, %v667
  %v669 = vand.u32 %v668, 4294901760
  %670 = vmatpush1.msra.mxu0 %v669
  %671 = vmatprep.subr.mxu0 0.0
  %672 = vmatpush1.msra.mxu0 0.0
  %673 = vmatprep.subr.mxu0 0.0
  %674 = vmatpush1.msra.mxu0 0.0
  %675 = vmatprep.subr.mxu0 0.0
  %676 = vmatpush1.msra.mxu0 0.0
  %677 = vmatprep.subr.mxu0 0.0
  %678 = vmatpush1.msra.mxu0 0.0
  %679 = vmatprep.subr.mxu0 0.0
  %680 = vmatpush1.msra.mxu0 0.0
  %681 = vmatprep.subr.mxu0 0.0
  %682 = vmatpush1.msra.mxu0 0.0
  %683 = vmatprep.subr.mxu0 0.0
  %684 = vmatpush1.msra.mxu0 0.0
  %685 = vmatprep.subr.mxu0 0.0
  %686 = vmatpush1.msra.mxu0 0.0
  %687 = vmatprep.subr.mxu0 0.0
  %688 = vmatpush1.msra.mxu0 0.0
  %689 = vmatprep.subr.mxu0 0.0
  %690 = vmatpush1.msra.mxu0 0.0
  %691 = vmatprep.subr.mxu0 0.0
  %692 = vmatpush1.msra.mxu0 0.0
  %693 = vmatprep.subr.mxu0 0.0
  %694 = vmatpush1.msra.mxu0 0.0
  %695 = vmatprep.subr.mxu0 0.0
  %696 = vmatpush1.msra.mxu0 0.0
  %697 = vmatprep.subr.mxu0 0.0
  %698 = vmatpush1.msra.mxu0 0.0
  %699 = vmatprep.subr.mxu0 0.0
  %700 = vmatpush1.msra.mxu0 0.0
  %701 = vmatprep.subr.mxu0 0.0
  %702 = vmatpush1.msra.mxu0 0.0
  %703 = vmatprep.subr.mxu0 0.0
  %704 = vmatpush1.msra.mxu0 0.0
  %705 = vmatprep.subr.mxu0 0.0
  %706 = vmatpush1.msra.mxu0 0.0
  %707 = vmatprep.subr.mxu0 0.0
  %708 = vmatpush1.msra.mxu0 0.0
  %709 = vmatprep.subr.mxu0 0.0
  %710 = vmatpush1.msra.mxu0 0.0
  %711 = vmatprep.subr.mxu0 0.0
  %712 = vmatpush1.msra.mxu0 0.0
  %713 = vmatprep.subr.mxu0 0.0
  %714 = vmatpush1.msra.mxu0 0.0
  %715 = vmatprep.subr.mxu0 0.0
  %716 = vmatpush1.msra.mxu0 0.0
  %717 = vmatprep.subr.mxu0 0.0
  %718 = vmatpush1.msra.mxu0 0.0
  %719 = vmatprep.subr.mxu0 0.0
  %720 = vmatpush1.msra.mxu0 0.0
  %721 = vmatprep.subr.mxu0 0.0
  %722 = vmatpush1.msra.mxu0 0.0
  %723 = vmatprep.subr.mxu0 0.0
  %724 = vmatpush1.msra.mxu0 0.0
  %725 = vmatprep.subr.mxu0 0.0
  %726 = vmatpush1.msra.mxu0 0.0
  %727 = vmatprep.mubr.f32.mxu0 0.0
  %v728 = vand.u32 %v562, 4294901760
  %729 = vmatmul.mubr.f32.gmra.mrb[0].mxu0 %v728
  %v730 = vpop.f32.mrb[0].mxu0
  %v731 = vadd.f32 %v640, %v730
  %v732 = vpop.f32.mrb[0].mxu0
  %733 = vdwg.mxu0
  %734 = vmatprep.subr.mxu0 0.0
  %v735 = vand.u32 %v557, 4294901760
  %v736 = vsub.f32 %v557, %v735
  %737 = vmatpush1.msra.mxu0 %v736
  %738 = vmatprep.subr.mxu0 0.0
  %v739 = vand.u32 %v558, 4294901760
  %v740 = vsub.f32 %v558, %v739
  %741 = vmatpush1.msra.mxu0 %v740
  %742 = vmatprep.subr.mxu0 0.0
  %v743 = vand.u32 %v559, 4294901760
  %v744 = vsub.f32 %v559, %v743
  %745 = vmatpush1.msra.mxu0 %v744
  %746 = vmatprep.subr.mxu0 0.0
  %v747 = vand.u32 %v560, 4294901760
  %v748 = vsub.f32 %v560, %v747
  %749 = vmatpush1.msra.mxu0 %v748
  %750 = vmatprep.subr.mxu0 0.0
  %751 = vmatpush1.msra.mxu0 0.0
  %752 = vmatprep.subr.mxu0 0.0
  %753 = vmatpush1.msra.mxu0 0.0
  %754 = vmatprep.subr.mxu0 0.0
  %755 = vmatpush1.msra.mxu0 0.0
  %756 = vmatprep.subr.mxu0 0.0
  %757 = vmatpush1.msra.mxu0 0.0
  %758 = vmatprep.subr.mxu0 0.0
  %759 = vmatpush1.msra.mxu0 0.0
  %760 = vmatprep.subr.mxu0 0.0
  %761 = vmatpush1.msra.mxu0 0.0
  %762 = vmatprep.subr.mxu0 0.0
  %763 = vmatpush1.msra.mxu0 0.0
  %764 = vmatprep.subr.mxu0 0.0
  %765 = vmatpush1.msra.mxu0 0.0
  %766 = vmatprep.subr.mxu0 0.0
  %767 = vmatpush1.msra.mxu0 0.0
  %768 = vmatprep.subr.mxu0 0.0
  %769 = vmatpush1.msra.mxu0 0.0
  %770 = vmatprep.subr.mxu0 0.0
  %771 = vmatpush1.msra.mxu0 0.0
  %772 = vmatprep.subr.mxu0 0.0
  %773 = vmatpush1.msra.mxu0 0.0
  %774 = vmatprep.subr.mxu0 0.0
  %775 = vmatpush1.msra.mxu0 0.0
  %776 = vmatprep.subr.mxu0 0.0
  %777 = vmatpush1.msra.mxu0 0.0
  %778 = vmatprep.subr.mxu0 0.0
  %779 = vmatpush1.msra.mxu0 0.0
  %780 = vmatprep.subr.mxu0 0.0
  %781 = vmatpush1.msra.mxu0 0.0
  %782 = vmatprep.subr.mxu0 0.0
  %783 = vmatpush1.msra.mxu0 0.0
  %784 = vmatprep.subr.mxu0 0.0
  %785 = vmatpush1.msra.mxu0 0.0
  %786 = vmatprep.subr.mxu0 0.0
  %787 = vmatpush1.msra.mxu0 0.0
  %788 = vmatprep.subr.mxu0 0.0
  %789 = vmatpush1.msra.mxu0 0.0
  %790 = vmatprep.subr.mxu0 0.0
  %791 = vmatpush1.msra.mxu0 0.0
  %792 = vmatprep.subr.mxu0 0.0
  %793 = vmatpush1.msra.mxu0 0.0
  %794 = vmatprep.subr.mxu0 0.0
  %795 = vmatpush1.msra.mxu0 0.0
  %796 = vmatprep.subr.mxu0 0.0
  %797 = vmatpush1.msra.mxu0 0.0
  %798 = vmatprep.subr.mxu0 0.0
  %799 = vmatpush1.msra.mxu0 0.0
  %800 = vmatprep.subr.mxu0 0.0
  %801 = vmatpush1.msra.mxu0 0.0
  %802 = vmatprep.subr.mxu0 0.0
  %803 = vmatpush1.msra.mxu0 0.0
  %804 = vmatprep.subr.mxu0 0.0
  %805 = vmatpush1.msra.mxu0 0.0
  %806 = vmatprep.mubr.f32.mxu0 0.0
  %v807 = vand.u32 %v562, 4294901760
  %v808 = vsub.f32 %v562, %v807
  %809 = vmatmul.mubr.f32.gmra.mrb[0].mxu0 %v808
  %v810 = vpop.f32.mrb[0].mxu0
  %v811 = vadd.f32 %v731, %v810
  %v812 = vpop.f32.mrb[0].mxu0
  %813 = vdwg.mxu0
  %814 = vmatprep.subr.mxu0 0.0
  %v815 = vand.u32 %v557, 4294901760
  %816 = vmatpush1.msra.mxu0 %v815
  %817 = vmatprep.subr.mxu0 0.0
  %v818 = vand.u32 %v558, 4294901760
  %819 = vmatpush1.msra.mxu0 %v818
  %820 = vmatprep.subr.mxu0 0.0
  %v821 = vand.u32 %v559, 4294901760
  %822 = vmatpush1.msra.mxu0 %v821
  %823 = vmatprep.subr.mxu0 0.0
  %v824 = vand.u32 %v560, 4294901760
  %825 = vmatpush1.msra.mxu0 %v824
  %826 = vmatprep.subr.mxu0 0.0
  %827 = vmatpush1.msra.mxu0 0.0
  %828 = vmatprep.subr.mxu0 0.0
  %829 = vmatpush1.msra.mxu0 0.0
  %830 = vmatprep.subr.mxu0 0.0
  %831 = vmatpush1.msra.mxu0 0.0
  %832 = vmatprep.subr.mxu0 0.0
  %833 = vmatpush1.msra.mxu0 0.0
  %834 = vmatprep.subr.mxu0 0.0
  %835 = vmatpush1.msra.mxu0 0.0
  %836 = vmatprep.subr.mxu0 0.0
  %837 = vmatpush1.msra.mxu0 0.0
  %838 = vmatprep.subr.mxu0 0.0
  %839 = vmatpush1.msra.mxu0 0.0
  %840 = vmatprep.subr.mxu0 0.0
  %841 = vmatpush1.msra.mxu0 0.0
  %842 = vmatprep.subr.mxu0 0.0
  %843 = vmatpush1.msra.mxu0 0.0
  %844 = vmatprep.subr.mxu0 0.0
  %845 = vmatpush1.msra.mxu0 0.0
  %846 = vmatprep.subr.mxu0 0.0
  %847 = vmatpush1.msra.mxu0 0.0
  %848 = vmatprep.subr.mxu0 0.0
  %849 = vmatpush1.msra.mxu0 0.0
  %850 = vmatprep.subr.mxu0 0.0
  %851 = vmatpush1.msra.mxu0 0.0
  %852 = vmatprep.subr.mxu0 0.0
  %853 = vmatpush1.msra.mxu0 0.0
  %854 = vmatprep.subr.mxu0 0.0
  %855 = vmatpush1.msra.mxu0 0.0
  %856 = vmatprep.subr.mxu0 0.0
  %857 = vmatpush1.msra.mxu0 0.0
  %858 = vmatprep.subr.mxu0 0.0
  %859 = vmatpush1.msra.mxu0 0.0
  %860 = vmatprep.subr.mxu0 0.0
  %861 = vmatpush1.msra.mxu0 0.0
  %862 = vmatprep.subr.mxu0 0.0
  %863 = vmatpush1.msra.mxu0 0.0
  %864 = vmatprep.subr.mxu0 0.0
  %865 = vmatpush1.msra.mxu0 0.0
  %866 = vmatprep.subr.mxu0 0.0
  %867 = vmatpush1.msra.mxu0 0.0
  %868 = vmatprep.subr.mxu0 0.0
  %869 = vmatpush1.msra.mxu0 0.0
  %870 = vmatprep.subr.mxu0 0.0
  %871 = vmatpush1.msra.mxu0 0.0
  %872 = vmatprep.subr.mxu0 0.0
  %873 = vmatpush1.msra.mxu0 0.0
  %874 = vmatprep.subr.mxu0 0.0
  %875 = vmatpush1.msra.mxu0 0.0
  %876 = vmatprep.subr.mxu0 0.0
  %877 = vmatpush1.msra.mxu0 0.0
  %878 = vmatprep.subr.mxu0 0.0
  %879 = vmatpush1.msra.mxu0 0.0
  %880 = vmatprep.subr.mxu0 0.0
  %881 = vmatpush1.msra.mxu0 0.0
  %882 = vmatprep.mubr.f32.mxu0 0.0
  %v883 = vand.u32 %v562, 4294901760
  %v884 = vsub.f32 %v562, %v883
  %v885 = vand.u32 %v884, 4294901760
  %886 = vmatmul.mubr.f32.gmra.mrb[0].mxu0 %v885
  %v887 = vpop.f32.mrb[0].mxu0
  %v888 = vadd.f32 %v811, %v887
  %v889 = vpop.f32.mrb[0].mxu0
  %890 = vdwg.mxu0
  %891 = vmatprep.subr.mxu0 0.0
  %v892 = vand.u32 %v557, 4294901760
  %v893 = vsub.f32 %v557, %v892
  %v894 = vand.u32 %v893, 4294901760
  %895 = vmatpush1.msra.mxu0 %v894
  %896 = vmatprep.subr.mxu0 0.0
  %v897 = vand.u32 %v558, 4294901760
  %v898 = vsub.f32 %v558, %v897
  %v899 = vand.u32 %v898, 4294901760
  %900 = vmatpush1.msra.mxu0 %v899
  %901 = vmatprep.subr.mxu0 0.0
  %v902 = vand.u32 %v559, 4294901760
  %v903 = vsub.f32 %v559, %v902
  %v904 = vand.u32 %v903, 4294901760
  %905 = vmatpush1.msra.mxu0 %v904
  %906 = vmatprep.subr.mxu0 0.0
  %v907 = vand.u32 %v560, 4294901760
  %v908 = vsub.f32 %v560, %v907
  %v909 = vand.u32 %v908, 4294901760
  %910 = vmatpush1.msra.mxu0 %v909
  %911 = vmatprep.subr.mxu0 0.0
  %912 = vmatpush1.msra.mxu0 0.0
  %913 = vmatprep.subr.mxu0 0.0
  %914 = vmatpush1.msra.mxu0 0.0
  %915 = vmatprep.subr.mxu0 0.0
  %916 = vmatpush1.msra.mxu0 0.0
  %917 = vmatprep.subr.mxu0 0.0
  %918 = vmatpush1.msra.mxu0 0.0
  %919 = vmatprep.subr.mxu0 0.0
  %920 = vmatpush1.msra.mxu0 0.0
  %921 = vmatprep.subr.mxu0 0.0
  %922 = vmatpush1.msra.mxu0 0.0
  %923 = vmatprep.subr.mxu0 0.0
  %924 = vmatpush1.msra.mxu0 0.0
  %925 = vmatprep.subr.mxu0 0.0
  %926 = vmatpush1.msra.mxu0 0.0
  %927 = vmatprep.subr.mxu0 0.0
  %928 = vmatpush1.msra.mxu0 0.0
  %929 = vmatprep.subr.mxu0 0.0
  %930 = vmatpush1.msra.mxu0 0.0
  %931 = vmatprep.subr.mxu0 0.0
  %932 = vmatpush1.msra.mxu0 0.0
  %933 = vmatprep.subr.mxu0 0.0
  %934 = vmatpush1.msra.mxu0 0.0
  %935 = vmatprep.subr.mxu0 0.0
  %936 = vmatpush1.msra.mxu0 0.0
  %937 = vmatprep.subr.mxu0 0.0
  %938 = vmatpush1.msra.mxu0 0.0
  %939 = vmatprep.subr.mxu0 0.0
  %940 = vmatpush1.msra.mxu0 0.0
  %941 = vmatprep.subr.mxu0 0.0
  %942 = vmatpush1.msra.mxu0 0.0
  %943 = vmatprep.subr.mxu0 0.0
  %944 = vmatpush1.msra.mxu0 0.0
  %945 = vmatprep.subr.mxu0 0.0
  %946 = vmatpush1.msra.mxu0 0.0
  %947 = vmatprep.subr.mxu0 0.0
  %948 = vmatpush1.msra.mxu0 0.0
  %949 = vmatprep.subr.mxu0 0.0
  %950 = vmatpush1.msra.mxu0 0.0
  %951 = vmatprep.subr.mxu0 0.0
  %952 = vmatpush1.msra.mxu0 0.0
  %953 = vmatprep.subr.mxu0 0.0
  %954 = vmatpush1.msra.mxu0 0.0
  %955 = vmatprep.subr.mxu0 0.0
  %956 = vmatpush1.msra.mxu0 0.0
  %957 = vmatprep.subr.mxu0 0.0
  %958 = vmatpush1.msra.mxu0 0.0
  %959 = vmatprep.subr.mxu0 0.0
  %960 = vmatpush1.msra.mxu0 0.0
  %961 = vmatprep.subr.mxu0 0.0
  %962 = vmatpush1.msra.mxu0 0.0
  %963 = vmatprep.subr.mxu0 0.0
  %964 = vmatpush1.msra.mxu0 0.0
  %965 = vmatprep.subr.mxu0 0.0
  %966 = vmatpush1.msra.mxu0 0.0
  %967 = vmatprep.mubr.f32.mxu0 0.0
  %v968 = vand.u32 %v562, 4294901760
  %969 = vmatmul.mubr.f32.gmra.mrb[0].mxu0 %v968
  %v970 = vpop.f32.mrb[0].mxu0
  %v971 = vadd.f32 %v888, %v970
  %v972 = vpop.f32.mrb[0].mxu0
  %973 = vdwg.mxu0
  %974 = vmatprep.subr.mxu0 0.0
  %v975 = vand.u32 %v557, 4294901760
  %976 = vmatpush1.msra.mxu0 %v975
  %977 = vmatprep.subr.mxu0 0.0
  %v978 = vand.u32 %v558, 4294901760
  %979 = vmatpush1.msra.mxu0 %v978
  %980 = vmatprep.subr.mxu0 0.0
  %v981 = vand.u32 %v559, 4294901760
  %982 = vmatpush1.msra.mxu0 %v981
  %983 = vmatprep.subr.mxu0 0.0
  %v984 = vand.u32 %v560, 4294901760
  %985 = vmatpush1.msra.mxu0 %v984
  %986 = vmatprep.subr.mxu0 0.0
  %987 = vmatpush1.msra.mxu0 0.0
  %988 = vmatprep.subr.mxu0 0.0
  %989 = vmatpush1.msra.mxu0 0.0
  %990 = vmatprep.subr.mxu0 0.0
  %991 = vmatpush1.msra.mxu0 0.0
  %992 = vmatprep.subr.mxu0 0.0
  %993 = vmatpush1.msra.mxu0 0.0
  %994 = vmatprep.subr.mxu0 0.0
  %995 = vmatpush1.msra.mxu0 0.0
  %996 = vmatprep.subr.mxu0 0.0
  %997 = vmatpush1.msra.mxu0 0.0
  %998 = vmatprep.subr.mxu0 0.0
  %999 = vmatpush1.msra.mxu0 0.0
  %1000 = vmatprep.subr.mxu0 0.0
  %1001 = vmatpush1.msra.mxu0 0.0
  %1002 = vmatprep.subr.mxu0 0.0
  %1003 = vmatpush1.msra.mxu0 0.0
  %1004 = vmatprep.subr.mxu0 0.0
  %1005 = vmatpush1.msra.mxu0 0.0
  %1006 = vmatprep.subr.mxu0 0.0
  %1007 = vmatpush1.msra.mxu0 0.0
  %1008 = vmatprep.subr.mxu0 0.0
  %1009 = vmatpush1.msra.mxu0 0.0
  %1010 = vmatprep.subr.mxu0 0.0
  %1011 = vmatpush1.msra.mxu0 0.0
  %1012 = vmatprep.subr.mxu0 0.0
  %1013 = vmatpush1.msra.mxu0 0.0
  %1014 = vmatprep.subr.mxu0 0.0
  %1015 = vmatpush1.msra.mxu0 0.0
  %1016 = vmatprep.subr.mxu0 0.0
  %1017 = vmatpush1.msra.mxu0 0.0
  %1018 = vmatprep.subr.mxu0 0.0
  %1019 = vmatpush1.msra.mxu0 0.0
  %1020 = vmatprep.subr.mxu0 0.0
  %1021 = vmatpush1.msra.mxu0 0.0
  %1022 = vmatprep.subr.mxu0 0.0
  %1023 = vmatpush1.msra.mxu0 0.0
  %1024 = vmatprep.subr.mxu0 0.0
  %1025 = vmatpush1.msra.mxu0 0.0
  %1026 = vmatprep.subr.mxu0 0.0
  %1027 = vmatpush1.msra.mxu0 0.0
  %1028 = vmatprep.subr.mxu0 0.0
  %1029 = vmatpush1.msra.mxu0 0.0
  %1030 = vmatprep.subr.mxu0 0.0
  %1031 = vmatpush1.msra.mxu0 0.0
  %1032 = vmatprep.subr.mxu0 0.0
  %1033 = vmatpush1.msra.mxu0 0.0
  %1034 = vmatprep.subr.mxu0 0.0
  %1035 = vmatpush1.msra.mxu0 0.0
  %1036 = vmatprep.subr.mxu0 0.0
  %1037 = vmatpush1.msra.mxu0 0.0
  %1038 = vmatprep.subr.mxu0 0.0
  %1039 = vmatpush1.msra.mxu0 0.0
  %1040 = vmatprep.subr.mxu0 0.0
  %1041 = vmatpush1.msra.mxu0 0.0
  %1042 = vmatprep.mubr.f32.mxu0 0.0
  %v1043 = vand.u32 %v562, 4294901760
  %1044 = vmatmul.mubr.f32.gmra.mrb[0].mxu0 %v1043
  %v1045 = vpop.f32.mrb[0].mxu0
  %v1046 = vadd.f32 %v971, %v1045
  %v1047 = vpop.f32.mrb[0].mxu0
  %1048 = vdwg.mxu0
  %vm1049 = vcmask 130048
  %v1050 = vsel %vm1049, %v1046, 0.0
  %v1051 = vrot.slane %v1050, 4
  %v1052 = vadd.f32 %v1050, %v1051
  %v1053 = vrot.slane %v1052, 2
  %v1054 = vadd.f32 %v1052, %v1053
  %v1055 = vrot.slane %v1054, 1
  %v1056 = vadd.f32 %v1054, %v1055
  %v1057 = vmul.f32 %v1056, 0.125
  %v1058 = vmul.f32 %v1046, %v1046
  %v1059 = vsel %vm1049, %v1058, 0.0
  %v1060 = vrot.slane %v1059, 4
  %v1061 = vadd.f32 %v1059, %v1060
  %v1062 = vrot.slane %v1061, 2
  %v1063 = vadd.f32 %v1061, %v1062
  %v1064 = vrot.slane %v1063, 1
  %v1065 = vadd.f32 %v1063, %v1064
  %v1066 = vmul.f32 %v1065, 0.125
  %v1067 = vmul.f32 %v1057, %v1057
  %v1068 = vsub.f32 %v1066, %v1067
  %v1069 = vmax.f32 %v1068, 0.0
  %v1070 = vadd.f32 %v1069, 1e-05
  %v1071 = vrsqrt.pop %v1070
  %v1072 = vmul.f32 %v20, %v1071
  %v1073 = vsub.f32 %v1046, %v1057
  %v1074 = vlaneseq
  %v1075 = vshrl.u32 %v1074, 7
  %v1076 = vsub.s32 2, %v1075
  %v1077 = vrot.slane %v1072, %v1076
  %v1078 = vmul.f32 %v1073, %v1077
  %v1079 = vlaneseq
  %v1080 = vshrl.u32 %v1079, 7
  %v1081 = vsub.s32 3, %v1080
  %v1082 = vrot.slane %v20, %v1081
  %v1083 = vadd.f32 %v1078, %v1082
  %vm1084 = vcmp.gt.f32.partialorder %v1083, 0.0
  %v1085 = vmin.f32 %v1083, 0.0
  %v1086 = vmul.f32 %v1085, 1.442695
  %v1087 = vpow.pop %v1086
  %v1088 = vsub.f32 %v1087, 1.0
  %v1089 = vmul.f32 %v1088, 1.6732632
  %v1090 = vsel %vm1084, %v1083, %v1089
  %v1091 = vmul.f32 %v1090, 1.050701
  %v1092 = vld [vmem:[%s3] sm:$0xff]
  %v1093 = vld [vmem:[%s3 + $0x8] sm:$0xff]
  %v1095 = vsel %vm1049, %v1091, 0
  %1097 = vmatprep.subr.mxu0 0.0
  %v1098 = vand.u32 %v1092, 4294901760
  %1099 = vmatpush1.msra.mxu0 %v1098
  %1100 = vmatprep.subr.mxu0 0.0
  %v1101 = vand.u32 %v1093, 4294901760
  %1102 = vmatpush1.msra.mxu0 %v1101
  %1103 = vmatprep.subr.mxu0 0.0
  %1104 = vmatpush1.msra.mxu0 0.0
  %1105 = vmatprep.subr.mxu0 0.0
  %1106 = vmatpush1.msra.mxu0 0.0
  %1107 = vmatprep.subr.mxu0 0.0
  %1108 = vmatpush1.msra.mxu0 0.0
  %1109 = vmatprep.subr.mxu0 0.0
  %1110 = vmatpush1.msra.mxu0 0.0
  %1111 = vmatprep.subr.mxu0 0.0
  %1112 = vmatpush1.msra.mxu0 0.0
  %1113 = vmatprep.subr.mxu0 0.0
  %1114 = vmatpush1.msra.mxu0 0.0
  %1115 = vmatprep.subr.mxu0 0.0
  %1116 = vmatpush1.msra.mxu0 0.0
  %1117 = vmatprep.subr.mxu0 0.0
  %1118 = vmatpush1.msra.mxu0 0.0
  %1119 = vmatprep.subr.mxu0 0.0
  %1120 = vmatpush1.msra.mxu0 0.0
  %1121 = vmatprep.subr.mxu0 0.0
  %1122 = vmatpush1.msra.mxu0 0.0
  %1123 = vmatprep.subr.mxu0 0.0
  %1124 = vmatpush1.msra.mxu0 0.0
  %1125 = vmatprep.subr.mxu0 0.0
  %1126 = vmatpush1.msra.mxu0 0.0
  %1127 = vmatprep.subr.mxu0 0.0
  %1128 = vmatpush1.msra.mxu0 0.0
  %1129 = vmatprep.subr.mxu0 0.0
  %1130 = vmatpush1.msra.mxu0 0.0
  %1131 = vmatprep.subr.mxu0 0.0
  %1132 = vmatpush1.msra.mxu0 0.0
  %1133 = vmatprep.subr.mxu0 0.0
  %1134 = vmatpush1.msra.mxu0 0.0
  %1135 = vmatprep.subr.mxu0 0.0
  %1136 = vmatpush1.msra.mxu0 0.0
  %1137 = vmatprep.subr.mxu0 0.0
  %1138 = vmatpush1.msra.mxu0 0.0
  %1139 = vmatprep.subr.mxu0 0.0
  %1140 = vmatpush1.msra.mxu0 0.0
  %1141 = vmatprep.subr.mxu0 0.0
  %1142 = vmatpush1.msra.mxu0 0.0
  %1143 = vmatprep.subr.mxu0 0.0
  %1144 = vmatpush1.msra.mxu0 0.0
  %1145 = vmatprep.subr.mxu0 0.0
  %1146 = vmatpush1.msra.mxu0 0.0
  %1147 = vmatprep.subr.mxu0 0.0
  %1148 = vmatpush1.msra.mxu0 0.0
  %1149 = vmatprep.subr.mxu0 0.0
  %1150 = vmatpush1.msra.mxu0 0.0
  %1151 = vmatprep.subr.mxu0 0.0
  %1152 = vmatpush1.msra.mxu0 0.0
  %1153 = vmatprep.subr.mxu0 0.0
  %1154 = vmatpush1.msra.mxu0 0.0
  %1155 = vmatprep.subr.mxu0 0.0
  %1156 = vmatpush1.msra.mxu0 0.0
  %1157 = vmatprep.subr.mxu0 0.0
  %1158 = vmatpush1.msra.mxu0 0.0
  %1159 = vmatprep.subr.mxu0 0.0
  %1160 = vmatpush1.msra.mxu0 0.0
  %1161 = vmatprep.subr.mxu0 0.0
  %1162 = vmatpush1.msra.mxu0 0.0
  %1163 = vmatprep.mubr.f32.mxu0 0.0
  %v1164 = vand.u32 %v1095, 4294901760
  %v1165 = vsub.f32 %v1095, %v1164
  %v1166 = vand.u32 %v1165, 4294901760
  %v1167 = vsub.f32 %v1165, %v1166
  %v1168 = vand.u32 %v1167, 4294901760
  %1169 = vmatmul.mubr.f32.gmra.mrb[0].mxu0 %v1168
  %v1170 = vpop.f32.mrb[0].mxu0
  %v1171 = vadd.f32 0.0, %v1170
  %v1172 = vpop.f32.mrb[0].mxu0
  %1173 = vdwg.mxu0
  %1174 = vmatprep.subr.mxu0 0.0
  %v1175 = vand.u32 %v1092, 4294901760
  %v1176 = vsub.f32 %v1092, %v1175
  %v1177 = vand.u32 %v1176, 4294901760
  %v1178 = vsub.f32 %v1176, %v1177
  %v1179 = vand.u32 %v1178, 4294901760
  %1180 = vmatpush1.msra.mxu0 %v1179
  %1181 = vmatprep.subr.mxu0 0.0
  %v1182 = vand.u32 %v1093, 4294901760
  %v1183 = vsub.f32 %v1093, %v1182
  %v1184 = vand.u32 %v1183, 4294901760
  %v1185 = vsub.f32 %v1183, %v1184
  %v1186 = vand.u32 %v1185, 4294901760
  %1187 = vmatpush1.msra.mxu0 %v1186
  %1188 = vmatprep.subr.mxu0 0.0
  %1189 = vmatpush1.msra.mxu0 0.0
  %1190 = vmatprep.subr.mxu0 0.0
  %1191 = vmatpush1.msra.mxu0 0.0
  %1192 = vmatprep.subr.mxu0 0.0
  %1193 = vmatpush1.msra.mxu0 0.0
  %1194 = vmatprep.subr.mxu0 0.0
  %1195 = vmatpush1.msra.mxu0 0.0
  %1196 = vmatprep.subr.mxu0 0.0
  %1197 = vmatpush1.msra.mxu0 0.0
  %1198 = vmatprep.subr.mxu0 0.0
  %1199 = vmatpush1.msra.mxu0 0.0
  %1200 = vmatprep.subr.mxu0 0.0
  %1201 = vmatpush1.msra.mxu0 0.0
  %1202 = vmatprep.subr.mxu0 0.0
  %1203 = vmatpush1.msra.mxu0 0.0
  %1204 = vmatprep.subr.mxu0 0.0
  %1205 = vmatpush1.msra.mxu0 0.0
  %1206 = vmatprep.subr.mxu0 0.0
  %1207 = vmatpush1.msra.mxu0 0.0
  %1208 = vmatprep.subr.mxu0 0.0
  %1209 = vmatpush1.msra.mxu0 0.0
  %1210 = vmatprep.subr.mxu0 0.0
  %1211 = vmatpush1.msra.mxu0 0.0
  %1212 = vmatprep.subr.mxu0 0.0
  %1213 = vmatpush1.msra.mxu0 0.0
  %1214 = vmatprep.subr.mxu0 0.0
  %1215 = vmatpush1.msra.mxu0 0.0
  %1216 = vmatprep.subr.mxu0 0.0
  %1217 = vmatpush1.msra.mxu0 0.0
  %1218 = vmatprep.subr.mxu0 0.0
  %1219 = vmatpush1.msra.mxu0 0.0
  %1220 = vmatprep.subr.mxu0 0.0
  %1221 = vmatpush1.msra.mxu0 0.0
  %1222 = vmatprep.subr.mxu0 0.0
  %1223 = vmatpush1.msra.mxu0 0.0
  %1224 = vmatprep.subr.mxu0 0.0
  %1225 = vmatpush1.msra.mxu0 0.0
  %1226 = vmatprep.subr.mxu0 0.0
  %1227 = vmatpush1.msra.mxu0 0.0
  %1228 = vmatprep.subr.mxu0 0.0
  %1229 = vmatpush1.msra.mxu0 0.0
  %1230 = vmatprep.subr.mxu0 0.0
  %1231 = vmatpush1.msra.mxu0 0.0
  %1232 = vmatprep.subr.mxu0 0.0
  %1233 = vmatpush1.msra.mxu0 0.0
  %1234 = vmatprep.subr.mxu0 0.0
  %1235 = vmatpush1.msra.mxu0 0.0
  %1236 = vmatprep.subr.mxu0 0.0
  %1237 = vmatpush1.msra.mxu0 0.0
  %1238 = vmatprep.subr.mxu0 0.0
  %1239 = vmatpush1.msra.mxu0 0.0
  %1240 = vmatprep.subr.mxu0 0.0
  %1241 = vmatpush1.msra.mxu0 0.0
  %1242 = vmatprep.subr.mxu0 0.0
  %1243 = vmatpush1.msra.mxu0 0.0
  %1244 = vmatprep.subr.mxu0 0.0
  %1245 = vmatpush1.msra.mxu0 0.0
  %1246 = vmatprep.subr.mxu0 0.0
  %1247 = vmatpush1.msra.mxu0 0.0
  %1248 = vmatprep.mubr.f32.mxu0 0.0
  %v1249 = vand.u32 %v1095, 4294901760
  %1250 = vmatmul.mubr.f32.gmra.mrb[0].mxu0 %v1249
  %v1251 = vpop.f32.mrb[0].mxu0
  %v1252 = vadd.f32 %v1171, %v1251
  %v1253 = vpop.f32.mrb[0].mxu0
  %1254 = vdwg.mxu0
  %1255 = vmatprep.subr.mxu0 0.0
  %v1256 = vand.u32 %v1092, 4294901760
  %v1257 = vsub.f32 %v1092, %v1256
  %1258 = vmatpush1.msra.mxu0 %v1257
  %1259 = vmatprep.subr.mxu0 0.0
  %v1260 = vand.u32 %v1093, 4294901760
  %v1261 = vsub.f32 %v1093, %v1260
  %1262 = vmatpush1.msra.mxu0 %v1261
  %1263 = vmatprep.subr.mxu0 0.0
  %1264 = vmatpush1.msra.mxu0 0.0
  %1265 = vmatprep.subr.mxu0 0.0
  %1266 = vmatpush1.msra.mxu0 0.0
  %1267 = vmatprep.subr.mxu0 0.0
  %1268 = vmatpush1.msra.mxu0 0.0
  %1269 = vmatprep.subr.mxu0 0.0
  %1270 = vmatpush1.msra.mxu0 0.0
  %1271 = vmatprep.subr.mxu0 0.0
  %1272 = vmatpush1.msra.mxu0 0.0
  %1273 = vmatprep.subr.mxu0 0.0
  %1274 = vmatpush1.msra.mxu0 0.0
  %1275 = vmatprep.subr.mxu0 0.0
  %1276 = vmatpush1.msra.mxu0 0.0
  %1277 = vmatprep.subr.mxu0 0.0
  %1278 = vmatpush1.msra.mxu0 0.0
  %1279 = vmatprep.subr.mxu0 0.0
  %1280 = vmatpush1.msra.mxu0 0.0
  %1281 = vmatprep.subr.mxu0 0.0
  %1282 = vmatpush1.msra.mxu0 0.0
  %1283 = vmatprep.subr.mxu0 0.0
  %1284 = vmatpush1.msra.mxu0 0.0
  %1285 = vmatprep.subr.mxu0 0.0
  %1286 = vmatpush1.msra.mxu0 0.0
  %1287 = vmatprep.subr.mxu0 0.0
  %1288 = vmatpush1.msra.mxu0 0.0
  %1289 = vmatprep.subr.mxu0 0.0
  %1290 = vmatpush1.msra.mxu0 0.0
  %1291 = vmatprep.subr.mxu0 0.0
  %1292 = vmatpush1.msra.mxu0 0.0
  %1293 = vmatprep.subr.mxu0 0.0
  %1294 = vmatpush1.msra.mxu0 0.0
  %1295 = vmatprep.subr.mxu0 0.0
  %1296 = vmatpush1.msra.mxu0 0.0
  %1297 = vmatprep.subr.mxu0 0.0
  %1298 = vmatpush1.msra.mxu0 0.0
  %1299 = vmatprep.subr.mxu0 0.0
  %1300 = vmatpush1.msra.mxu0 0.0
  %1301 = vmatprep.subr.mxu0 0.0
  %1302 = vmatpush1.msra.mxu0 0.0
  %1303 = vmatprep.subr.mxu0 0.0
  %1304 = vmatpush1.msra.mxu0 0.0
  %1305 = vmatprep.subr.mxu0 0.0
  %1306 = vmatpush1.msra.mxu0 0.0
  %1307 = vmatprep.subr.mxu0 0.0
  %1308 = vmatpush1.msra.mxu0 0.0
  %1309 = vmatprep.subr.mxu0 0.0
  %1310 = vmatpush1.msra.mxu0 0.0
  %1311 = vmatprep.subr.mxu0 0.0
  %1312 = vmatpush1.msra.mxu0 0.0
  %1313 = vmatprep.subr.mxu0 0.0
  %1314 = vmatpush1.msra.mxu0 0.0
  %1315 = vmatprep.subr.mxu0 0.0
  %1316 = vmatpush1.msra.mxu0 0.0
  %1317 = vmatprep.subr.mxu0 0.0
  %1318 = vmatpush1.msra.mxu0 0.0
  %1319 = vmatprep.subr.mxu0 0.0
  %1320 = vmatpush1.msra.mxu0 0.0
  %1321 = vmatprep.subr.mxu0 0.0
  %1322 = vmatpush1.msra.mxu0 0.0
  %1323 = vmatprep.mubr.f32.mxu0 0.0
  %v1324 = vand.u32 %v1095, 4294901760
  %v1325 = vsub.f32 %v1095, %v1324
  %1326 = vmatmul.mubr.f32.gmra.mrb[0].mxu0 %v1325
  %v1327 = vpop.f32.mrb[0].mxu0
  %v1328 = vadd.f32 %v1252, %v1327
  %v1329 = vpop.f32.mrb[0].mxu0
  %1330 = vdwg.mxu0
  %1331 = vmatprep.subr.mxu0 0.0
  %v1332 = vand.u32 %v1092, 4294901760
  %1333 = vmatpush1.msra.mxu0 %v1332
  %1334 = vmatprep.subr.mxu0 0.0
  %v1335 = vand.u32 %v1093, 4294901760
  %1336 = vmatpush1.msra.mxu0 %v1335
  %1337 = vmatprep.subr.mxu0 0.0
  %1338 = vmatpush1.msra.mxu0 0.0
  %1339 = vmatprep.subr.mxu0 0.0
  %1340 = vmatpush1.msra.mxu0 0.0
  %1341 = vmatprep.subr.mxu0 0.0
  %1342 = vmatpush1.msra.mxu0 0.0
  %1343 = vmatprep.subr.mxu0 0.0
  %1344 = vmatpush1.msra.mxu0 0.0
  %1345 = vmatprep.subr.mxu0 0.0
  %1346 = vmatpush1.msra.mxu0 0.0
  %1347 = vmatprep.subr.mxu0 0.0
  %1348 = vmatpush1.msra.mxu0 0.0
  %1349 = vmatprep.subr.mxu0 0.0
  %1350 = vmatpush1.msra.mxu0 0.0
  %1351 = vmatprep.subr.mxu0 0.0
  %1352 = vmatpush1.msra.mxu0 0.0
  %1353 = vmatprep.subr.mxu0 0.0
  %1354 = vmatpush1.msra.mxu0 0.0
  %1355 = vmatprep.subr.mxu0 0.0
  %1356 = vmatpush1.msra.mxu0 0.0
  %1357 = vmatprep.subr.mxu0 0.0
  %1358 = vmatpush1.msra.mxu0 0.0
  %1359 = vmatprep.subr.mxu0 0.0
  %1360 = vmatpush1.msra.mxu0 0.0
  %1361 = vmatprep.subr.mxu0 0.0
  %1362 = vmatpush1.msra.mxu0 0.0
  %1363 = vmatprep.subr.mxu0 0.0
  %1364 = vmatpush1.msra.mxu0 0.0
  %1365 = vmatprep.subr.mxu0 0.0
  %1366 = vmatpush1.msra.mxu0 0.0
  %1367 = vmatprep.subr.mxu0 0.0
  %1368 = vmatpush1.msra.mxu0 0.0
  %1369 = vmatprep.subr.mxu0 0.0
  %1370 = vmatpush1.msra.mxu0 0.0
  %1371 = vmatprep.subr.mxu0 0.0
  %1372 = vmatpush1.msra.mxu0 0.0
  %1373 = vmatprep.subr.mxu0 0.0
  %1374 = vmatpush1.msra.mxu0 0.0
  %1375 = vmatprep.subr.mxu0 0.0
  %1376 = vmatpush1.msra.mxu0 0.0
  %1377 = vmatprep.subr.mxu0 0.0
  %1378 = vmatpush1.msra.mxu0 0.0
  %1379 = vmatprep.subr.mxu0 0.0
  %1380 = vmatpush1.msra.mxu0 0.0
  %1381 = vmatprep.subr.mxu0 0.0
  %1382 = vmatpush1.msra.mxu0 0.0
  %1383 = vmatprep.subr.mxu0 0.0
  %1384 = vmatpush1.msra.mxu0 0.0
  %1385 = vmatprep.subr.mxu0 0.0
  %1386 = vmatpush1.msra.mxu0 0.0
  %1387 = vmatprep.subr.mxu0 0.0
  %1388 = vmatpush1.msra.mxu0 0.0
  %1389 = vmatprep.subr.mxu0 0.0
  %1390 = vmatpush1.msra.mxu0 0.0
  %1391 = vmatprep.subr.mxu0 0.0
  %1392 = vmatpush1.msra.mxu0 0.0
  %1393 = vmatprep.subr.mxu0 0.0
  %1394 = vmatpush1.msra.mxu0 0.0
  %1395 = vmatprep.subr.mxu0 0.0
  %1396 = vmatpush1.msra.mxu0 0.0
  %1397 = vmatprep.mubr.f32.mxu0 0.0
  %v1398 = vand.u32 %v1095, 4294901760
  %v1399 = vsub.f32 %v1095, %v1398
  %v1400 = vand.u32 %v1399, 4294901760
  %1401 = vmatmul.mubr.f32.gmra.mrb[0].mxu0 %v1400
  %v1402 = vpop.f32.mrb[0].mxu0
  %v1403 = vadd.f32 %v1328, %v1402
  %v1404 = vpop.f32.mrb[0].mxu0
  %1405 = vdwg.mxu0
  %1406 = vmatprep.subr.mxu0 0.0
  %v1407 = vand.u32 %v1092, 4294901760
  %v1408 = vsub.f32 %v1092, %v1407
  %v1409 = vand.u32 %v1408, 4294901760
  %1410 = vmatpush1.msra.mxu0 %v1409
  %1411 = vmatprep.subr.mxu0 0.0
  %v1412 = vand.u32 %v1093, 4294901760
  %v1413 = vsub.f32 %v1093, %v1412
  %v1414 = vand.u32 %v1413, 4294901760
  %1415 = vmatpush1.msra.mxu0 %v1414
  %1416 = vmatprep.subr.mxu0 0.0
  %1417 = vmatpush1.msra.mxu0 0.0
  %1418 = vmatprep.subr.mxu0 0.0
  %1419 = vmatpush1.msra.mxu0 0.0
  %1420 = vmatprep.subr.mxu0 0.0
  %1421 = vmatpush1.msra.mxu0 0.0
  %1422 = vmatprep.subr.mxu0 0.0
  %1423 = vmatpush1.msra.mxu0 0.0
  %1424 = vmatprep.subr.mxu0 0.0
  %1425 = vmatpush1.msra.mxu0 0.0
  %1426 = vmatprep.subr.mxu0 0.0
  %1427 = vmatpush1.msra.mxu0 0.0
  %1428 = vmatprep.subr.mxu0 0.0
  %1429 = vmatpush1.msra.mxu0 0.0
  %1430 = vmatprep.subr.mxu0 0.0
  %1431 = vmatpush1.msra.mxu0 0.0
  %1432 = vmatprep.subr.mxu0 0.0
  %1433 = vmatpush1.msra.mxu0 0.0
  %1434 = vmatprep.subr.mxu0 0.0
  %1435 = vmatpush1.msra.mxu0 0.0
  %1436 = vmatprep.subr.mxu0 0.0
  %1437 = vmatpush1.msra.mxu0 0.0
  %1438 = vmatprep.subr.mxu0 0.0
  %1439 = vmatpush1.msra.mxu0 0.0
  %1440 = vmatprep.subr.mxu0 0.0
  %1441 = vmatpush1.msra.mxu0 0.0
  %1442 = vmatprep.subr.mxu0 0.0
  %1443 = vmatpush1.msra.mxu0 0.0
  %1444 = vmatprep.subr.mxu0 0.0
  %1445 = vmatpush1.msra.mxu0 0.0
  %1446 = vmatprep.subr.mxu0 0.0
  %1447 = vmatpush1.msra.mxu0 0.0
  %1448 = vmatprep.subr.mxu0 0.0
  %1449 = vmatpush1.msra.mxu0 0.0
  %1450 = vmatprep.subr.mxu0 0.0
  %1451 = vmatpush1.msra.mxu0 0.0
  %1452 = vmatprep.subr.mxu0 0.0
  %1453 = vmatpush1.msra.mxu0 0.0
  %1454 = vmatprep.subr.mxu0 0.0
  %1455 = vmatpush1.msra.mxu0 0.0
  %1456 = vmatprep.subr.mxu0 0.0
  %1457 = vmatpush1.msra.mxu0 0.0
  %1458 = vmatprep.subr.mxu0 0.0
  %1459 = vmatpush1.msra.mxu0 0.0
  %1460 = vmatprep.subr.mxu0 0.0
  %1461 = vmatpush1.msra.mxu0 0.0
  %1462 = vmatprep.subr.mxu0 0.0
  %1463 = vmatpush1.msra.mxu0 0.0
  %1464 = vmatprep.subr.mxu0 0.0
  %1465 = vmatpush1.msra.mxu0 0.0
  %1466 = vmatprep.subr.mxu0 0.0
  %1467 = vmatpush1.msra.mxu0 0.0
  %1468 = vmatprep.subr.mxu0 0.0
  %1469 = vmatpush1.msra.mxu0 0.0
  %1470 = vmatprep.subr.mxu0 0.0
  %1471 = vmatpush1.msra.mxu0 0.0
  %1472 = vmatprep.subr.mxu0 0.0
  %1473 = vmatpush1.msra.mxu0 0.0
  %1474 = vmatprep.subr.mxu0 0.0
  %1475 = vmatpush1.msra.mxu0 0.0
  %1476 = vmatprep.mubr.f32.mxu0 0.0
  %v1477 = vand.u32 %v1095, 4294901760
  %1478 = vmatmul.mubr.f32.gmra.mrb[0].mxu0 %v1477
  %v1479 = vpop.f32.mrb[0].mxu0
  %v1480 = vadd.f32 %v1403, %v1479
  %v1481 = vpop.f32.mrb[0].mxu0
  %1482 = vdwg.mxu0
  %1483 = vmatprep.subr.mxu0 0.0
  %v1484 = vand.u32 %v1092, 4294901760
  %1485 = vmatpush1.msra.mxu0 %v1484
  %1486 = vmatprep.subr.mxu0 0.0
  %v1487 = vand.u32 %v1093, 4294901760
  %1488 = vmatpush1.msra.mxu0 %v1487
  %1489 = vmatprep.subr.mxu0 0.0
  %1490 = vmatpush1.msra.mxu0 0.0
  %1491 = vmatprep.subr.mxu0 0.0
  %1492 = vmatpush1.msra.mxu0 0.0
  %1493 = vmatprep.subr.mxu0 0.0
  %1494 = vmatpush1.msra.mxu0 0.0
  %1495 = vmatprep.subr.mxu0 0.0
  %1496 = vmatpush1.msra.mxu0 0.0
  %1497 = vmatprep.subr.mxu0 0.0
  %1498 = vmatpush1.msra.mxu0 0.0
  %1499 = vmatprep.subr.mxu0 0.0
  %1500 = vmatpush1.msra.mxu0 0.0
  %1501 = vmatprep.subr.mxu0 0.0
  %1502 = vmatpush1.msra.mxu0 0.0
  %1503 = vmatprep.subr.mxu0 0.0
  %1504 = vmatpush1.msra.mxu0 0.0
  %1505 = vmatprep.subr.mxu0 0.0
  %1506 = vmatpush1.msra.mxu0 0.0
  %1507 = vmatprep.subr.mxu0 0.0
  %1508 = vmatpush1.msra.mxu0 0.0
  %1509 = vmatprep.subr.mxu0 0.0
  %1510 = vmatpush1.msra.mxu0 0.0
  %1511 = vmatprep.subr.mxu0 0.0
  %1512 = vmatpush1.msra.mxu0 0.0
  %1513 = vmatprep.subr.mxu0 0.0
  %1514 = vmatpush1.msra.mxu0 0.0
  %1515 = vmatprep.subr.mxu0 0.0
  %1516 = vmatpush1.msra.mxu0 0.0
  %1517 = vmatprep.subr.mxu0 0.0
  %1518 = vmatpush1.msra.mxu0 0.0
  %1519 = vmatprep.subr.mxu0 0.0
  %1520 = vmatpush1.msra.mxu0 0.0
  %1521 = vmatprep.subr.mxu0 0.0
  %1522 = vmatpush1.msra.mxu0 0.0
  %1523 = vmatprep.subr.mxu0 0.0
  %1524 = vmatpush1.msra.mxu0 0.0
  %1525 = vmatprep.subr.mxu0 0.0
  %1526 = vmatpush1.msra.mxu0 0.0
  %1527 = vmatprep.subr.mxu0 0.0
  %1528 = vmatpush1.msra.mxu0 0.0
  %1529 = vmatprep.subr.mxu0 0.0
  %1530 = vmatpush1.msra.mxu0 0.0
  %1531 = vmatprep.subr.mxu0 0.0
  %1532 = vmatpush1.msra.mxu0 0.0
  %1533 = vmatprep.subr.mxu0 0.0
  %1534 = vmatpush1.msra.mxu0 0.0
  %1535 = vmatprep.subr.mxu0 0.0
  %1536 = vmatpush1.msra.mxu0 0.0
  %1537 = vmatprep.subr.mxu0 0.0
  %1538 = vmatpush1.msra.mxu0 0.0
  %1539 = vmatprep.subr.mxu0 0.0
  %1540 = vmatpush1.msra.mxu0 0.0
  %1541 = vmatprep.subr.mxu0 0.0
  %1542 = vmatpush1.msra.mxu0 0.0
  %1543 = vmatprep.subr.mxu0 0.0
  %1544 = vmatpush1.msra.mxu0 0.0
  %1545 = vmatprep.subr.mxu0 0.0
  %1546 = vmatpush1.msra.mxu0 0.0
  %1547 = vmatprep.subr.mxu0 0.0
  %1548 = vmatpush1.msra.mxu0 0.0
  %1549 = vmatprep.mubr.f32.mxu0 0.0
  %v1550 = vand.u32 %v1095, 4294901760
  %1551 = vmatmul.mubr.f32.gmra.mrb[0].mxu0 %v1550
  %v1552 = vpop.f32.mrb[0].mxu0
  %v1553 = vadd.f32 %v1480, %v1552
  %v1554 = vpop.f32.mrb[0].mxu0
  %1555 = vdwg.mxu0
  %vm1556 = vcmask 7168
  %v1557 = vsel %vm1556, %v1553, 0.0
  %v1558 = vrot.slane %v1557, 4
  %v1559 = vadd.f32 %v1557, %v1558
  %v1560 = vrot.slane %v1559, 2
  %v1561 = vadd.f32 %v1559, %v1560
  %v1562 = vrot.slane %v1561, 1
  %v1563 = vadd.f32 %v1561, %v1562
  %v1564 = vmul.f32 %v1563, 0.125
  %v1565 = vmul.f32 %v1553, %v1553
  %v1566 = vsel %vm1556, %v1565, 0.0
  %v1567 = vrot.slane %v1566, 4
  %v1568 = vadd.f32 %v1566, %v1567
  %v1569 = vrot.slane %v1568, 2
  %v1570 = vadd.f32 %v1568, %v1569
  %v1571 = vrot.slane %v1570, 1
  %v1572 = vadd.f32 %v1570, %v1571
  %v1573 = vmul.f32 %v1572, 0.125
  %v1574 = vmul.f32 %v1564, %v1564
  %v1575 = vsub.f32 %v1573, %v1574
  %v1576 = vmax.f32 %v1575, 0.0
  %v1577 = vadd.f32 %v1576, 1e-05
  %v1578 = vrsqrt.pop %v1577
  %v1579 = vmul.f32 %v20, %v1578
  %v1580 = vsub.f32 %v1553, %v1564
  %v1581 = vlaneseq
  %v1582 = vshrl.u32 %v1581, 7
  %v1583 = vsub.s32 4, %v1582
  %v1584 = vrot.slane %v1579, %v1583
  %v1585 = vmul.f32 %v1580, %v1584
  %v1586 = vlaneseq
  %v1587 = vshrl.u32 %v1586, 7
  %v1588 = vsub.s32 5, %v1587
  %v1589 = vrot.slane %v20, %v1588
  %v1590 = vadd.f32 %v1585, %v1589
  %vm1591 = vcmp.gt.f32.partialorder %v1590, 0.0
  %v1592 = vmin.f32 %v1590, 0.0
  %v1593 = vmul.f32 %v1592, 1.442695
  %v1594 = vpow.pop %v1593
  %v1595 = vsub.f32 %v1594, 1.0
  %v1596 = vmul.f32 %v1595, 1.6732632
  %v1597 = vsel %vm1591, %v1590, %v1596
  %v1598 = vmul.f32 %v1597, 1.050701
  %1599 = vst.msk [vmem:[%s5] sm:$0xff] %vm1556, %v1598
  // Predicated region
  $region22: #{point_hazard_forward.1} parent=0 // pred_check
    _
  $region23: #{point_hazard_forward.1} parent=0 // pred_check_branch
    %1601 = sbr.rel (0) target = $region25
  $region24: #{point_hazard_forward.1} parent=0 // pred_region
    _
  $region25: #{point_hazard_forward.1} parent=0 // pred_fallthru
    _
  // Predicated region
  $region26: #{point_hazard_forward.1} parent=0 // pred_check
    _
  $region27: #{point_hazard_forward.1} parent=0 // pred_check_branch
    %1603 = sbr.rel (0) target = $region29
  $region28: #{point_hazard_forward.1} parent=0 // pred_region
    _
  $region29: #{point_hazard_forward.1} parent=0 // pred_fallthru
    _

</llo_original>
